<compile_context>
chip_gen: v5e
topology: v5e:2x2
jax: 0.10.0
libtpu: 0.0.40
codegen_flags: <defaults>
</compile_context>

<pallas_src>
import functools

import jax
import jax.numpy as jnp
from jax.experimental import pallas as pl
from jax.experimental.pallas import tpu as pltpu

# ---------------- configuration (small synthetic shapes) ----------------
B = 2                        # batch
IMG_C, IMG_H, IMG_W = 3, 16, 16
LAT_C, LAT_H, LAT_W = 4, 8, 8            # VAE latent: 4 channels, /2 spatial
P = LAT_H * LAT_W                        # latent pixels per image (64)
SEQ = 8                                  # text sequence length
H_TXT = 32                               # text hidden size
C_UNET = 32                              # UNet inner width
CT = 32                                  # timestep-embedding width
VOCAB = 64
NUM_TRAIN_TIMESTEPS = 1000
VAE_SCALING = 0.18215
DIFFUSION_LOSS_WEIGHT = 1.0
IP2P_DROPOUT = 0.05

PATCH_K = IMG_C * 4                      # 12  (2x2 patchified RGB)
VAE_N = 2 * LAT_C                        # 8   (mean | logvar)

_VMEM = pltpu.MemorySpace.VMEM
_SMEM = pltpu.MemorySpace.SMEM

# ---- DDPM linear-beta schedule, hoisted out of the forward pass ----
_BETAS = jnp.linspace(1e-4, 0.02, NUM_TRAIN_TIMESTEPS, dtype=jnp.float32)
_ACP = jnp.cumprod(1.0 - _BETAS)
_SQRT_ACP = jnp.sqrt(_ACP)
_SQRT_1M_ACP = jnp.sqrt(1.0 - _ACP)

# ---- packed weight-slab column offsets (all these matrices have K = 32) ----
_O_TXTW, _O_WT, _O_WQ, _O_WK, _O_WV, _O_WO, _O_WOUT = 0, 32, 64, 96, 128, 160, 192
_W_SLAB_N = _O_WOUT + LAT_C              # 196
_O_TXTB, _O_BT, _O_BIN, _O_BOUT = 0, 32, 64, 96
_B_SLAB_N = 128                          # bias slab padded to a full vreg


def _vspecs(n):
    return [pl.BlockSpec(memory_space=_VMEM) for _ in range(n)]


# ---------------------------- fused Pallas kernel ----------------------------
def _ip2p_fused_kernel(xe_ref, xo_ref, tok_ref, pmask_ref, temb_ref,
                       noise_ref, eps_ref, coef_ref,
                       vae_w_ref, vae_b_ref, w_in_ref, w_slab_ref, b_slab_ref,
                       loss_ref, *, scale, weight):
    f32 = jnp.float32

    # ---- unpack the weight / bias slabs with static lane slices ----
    w = w_slab_ref[...]
    b = b_slab_ref[...]
    txt_w = w[:, _O_TXTW:_O_TXTW + H_TXT]
    w_t = w[:, _O_WT:_O_WT + C_UNET]
    wq = w[:, _O_WQ:_O_WQ + C_UNET]
    wk = w[:, _O_WK:_O_WK + C_UNET]
    wv = w[:, _O_WV:_O_WV + C_UNET]
    wo = w[:, _O_WO:_O_WO + C_UNET]
    w_out = w[:, _O_WOUT:_O_WOUT + LAT_C]
    txt_b = b[:, _O_TXTB:_O_TXTB + H_TXT]
    b_t = b[:, _O_BT:_O_BT + C_UNET]
    b_in = b[:, _O_BIN:_O_BIN + C_UNET]
    b_out = b[:, _O_BOUT:_O_BOUT + LAT_C]

    # ---- CLIP text stand-in: B prompts ++ B tiled null prompts, one matmul ----
    enc = jnp.dot(tok_ref[...], txt_w, preferred_element_type=f32) + txt_b
    text2d = enc[0:B * SEQ]                       # (B*SEQ, H)
    null2d = enc[B * SEQ:2 * B * SEQ]             # (B*SEQ, H) (null tiled B times)
    drop = jnp.broadcast_to(pmask_ref[...] != 0.0, (B * SEQ, H_TXT))
    text2d = jnp.where(drop, null2d, text2d)      # prompt dropout (torch.where)

    # ---- VAE encode (edited -> latent_dist.sample, original -> mode) ----
    vae_w = vae_w_ref[...]
    vae_b = vae_b_ref[...]
    enc_e = jnp.dot(xe_ref[...], vae_w, preferred_element_type=f32) + vae_b
    enc_o = jnp.dot(xo_ref[...], vae_w, preferred_element_type=f32) + vae_b
    mean_e = enc_e[:, 0:LAT_C]
    logvar_e = enc_e[:, LAT_C:2 * LAT_C]
    mean_o = enc_o[:, 0:LAT_C]
    std_e = jnp.exp(0.5 * jnp.clip(logvar_e, -30.0, 20.0))
    latents = (mean_e + std_e * eps_ref[...]) * VAE_SCALING

    # ---- DDPM add_noise + InstructPix2Pix image dropout (channels-last) ----
    cf = coef_ref[...]                            # cols: sqrt_acp | sqrt_1m | imask
    noise = noise_ref[...]
    noisy = cf[:, 0:1] * latents + cf[:, 1:2] * noise
    masked = cf[:, 2:3] * mean_o

    # ---- UNet stand-in: conv_in + t-emb + cross-attention + conv_out ----
    # torch.cat([noisy, masked], dim=channel) @ w_in  ==  split matmul (identical).
    w_in = w_in_ref[...]
    h = (jnp.dot(noisy, w_in[0:LAT_C], preferred_element_type=f32)
         + jnp.dot(masked, w_in[LAT_C:2 * LAT_C], preferred_element_type=f32)
         + b_in)
    h = h + jnp.dot(temb_ref[...], w_t, preferred_element_type=f32) + b_t

    q = jnp.dot(h, wq, preferred_element_type=f32).reshape(B, P, C_UNET)
    k = jnp.dot(text2d, wk, preferred_element_type=f32).reshape(B, SEQ, C_UNET)
    v = jnp.dot(text2d, wv, preferred_element_type=f32).reshape(B, SEQ, C_UNET)
    s = jnp.einsum('bpd,bsd->bps', q, k, preferred_element_type=f32) * scale
    s = s - jnp.max(s, axis=-1, keepdims=True)
    a = jnp.exp(s)
    a = a * pl.reciprocal(jnp.sum(a, axis=-1, keepdims=True), approx=True)
    ctx = jnp.einsum('bps,bsd->bpd', a, v, preferred_element_type=f32)
    h = h + jnp.dot(ctx.reshape(B * P, C_UNET), wo, preferred_element_type=f32)
    pred = jnp.dot(h, w_out, preferred_element_type=f32) + b_out   # (B*P, LAT_C)

    # ---- prediction_type == 'epsilon': target = noise; weighted MSE ----
    d = pred - noise
    loss_ref[0, 0] = jnp.mean(d * d) * weight


def ip2p_fused(xe, xo, tok_all, pmask, temb, noise, eps, coefs,
               vae_w, vae_b, w_in, w_slab, b_slab):
    # Gridless single invocation: all operands fit comfortably in VMEM at these
    # shapes.  TODO(synk): at real SD shapes (64x64x320 latents) add a pixel-tile
    # grid with dimension_semantics=("parallel",) and tiled BlockSpecs sized for
    # the 64 MiB v7x VMEM budget.
    out = pl.pallas_call(
        functools.partial(_ip2p_fused_kernel,
                          scale=1.0 / float(C_UNET) ** 0.5,
                          weight=float(DIFFUSION_LOSS_WEIGHT)),
        out_shape=jax.ShapeDtypeStruct((1, 1), jnp.float32),
        in_specs=_vspecs(13),
        out_specs=pl.BlockSpec(memory_space=_SMEM),
    )(xe, xo, tok_all, pmask, temb, noise, eps, coefs,
      vae_w, vae_b, w_in, w_slab, b_slab)
    return out[0, 0]


# ------------------------------ parameters -------------------------------
def init_params(key):
    ks = jax.random.split(key, 11)

    def w(k, shape, scale=0.05, dtype=jnp.float32):
        return (jax.random.normal(k, shape, jnp.float32) * scale).astype(dtype)

    return {
        "tok_emb":    w(ks[0], (VOCAB, H_TXT), 0.02),
        "pos_emb":    w(ks[1], (SEQ, H_TXT), 0.02),
        "txt_w":      w(ks[2], (H_TXT, H_TXT), 0.05),
        "txt_b":      jnp.zeros((1, H_TXT), jnp.float32),
        "vae_w":      w(ks[3], (PATCH_K, VAE_N), 0.1, jnp.bfloat16),
        "vae_b":      jnp.zeros((1, VAE_N), jnp.float32),
        "unet_w_in":  w(ks[4], (2 * LAT_C, C_UNET)),
        "unet_b_in":  jnp.zeros((1, C_UNET), jnp.float32),
        "unet_w_t":   w(ks[5], (CT, C_UNET)),
        "unet_b_t":   jnp.zeros((1, C_UNET), jnp.float32),
        "unet_wq":    w(ks[6], (C_UNET, C_UNET)),
        "unet_wk":    w(ks[7], (H_TXT, C_UNET)),
        "unet_wv":    w(ks[8], (H_TXT, C_UNET)),
        "unet_wo":    w(ks[9], (C_UNET, C_UNET)),
        "unet_w_out": w(ks[10], (C_UNET, LAT_C)),
        "unet_b_out": jnp.zeros((1, LAT_C), jnp.float32),
    }


# ------------------------------ forward pass ------------------------------
def _patchify(img_nchw):
    """2x2/stride-2 patchify (stand-in VAE conv): NCHW -> (B*P, IMG_C*4)."""
    b = img_nchw.shape[0]
    x = img_nchw.reshape(b, IMG_C, LAT_H, 2, LAT_W, 2)
    return x.transpose(0, 2, 4, 1, 3, 5).reshape(b * LAT_H * LAT_W, PATCH_K)


@jax.jit
def _forward_impl(params, original_img, edited_img, input_ids, rng):
    k_p, k_noise, k_t, k_eps = jax.random.split(rng, 4)
    random_p = jax.random.uniform(k_p, (B,), jnp.float32)

    # ---- text branch: token + positional embeddings (text rows ++ null rows) ----
    tok = jnp.take(params["tok_emb"], input_ids, axis=0) + params["pos_emb"][None]
    null_ids = jnp.zeros((1, SEQ), jnp.int32).at[0, 0].set(1)          # '' prompt
    null_tok = jnp.take(params["tok_emb"], null_ids, axis=0) + params["pos_emb"][None]
    null_tok = jnp.broadcast_to(null_tok, (B, SEQ, H_TXT))
    tok_all = jnp.concatenate(
        [tok.reshape(B * SEQ, H_TXT), null_tok.reshape(B * SEQ, H_TXT)],
        axis=0).astype(jnp.float32)                                    # (2*B*SEQ, H)

    prompt_mask = (random_p < 2 * IP2P_DROPOUT).astype(jnp.float32)    # (B,)
    pmask = jnp.broadcast_to(prompt_mask[:, None], (B, SEQ)).reshape(B * SEQ, 1)

    # ---- patchified bf16 VAE inputs (channels-last pixels) ----
    xe = _patchify(edited_img.astype(jnp.bfloat16))
    xo = _patchify(original_img.astype(jnp.bfloat16))

    # ---- diffusion noise / timesteps / schedule coefficients ----
    eps = jax.random.normal(k_eps, (B * P, LAT_C), jnp.float32)        # reparam
    noise = jax.random.normal(k_noise, (B * P, LAT_C), jnp.float32)    # DDPM noise
    timesteps = jax.random.randint(k_t, (B,), 0, NUM_TRAIN_TIMESTEPS, dtype=jnp.int32)
    image_mask = 1.0 - ((random_p >= IP2P_DROPOUT).astype(jnp.float32)
                        * (random_p < 3 * IP2P_DROPOUT).astype(jnp.float32))
    coefs = jnp.stack([_SQRT_ACP[timesteps], _SQRT_1M_ACP[timesteps],
                       image_mask, jnp.zeros((B,), jnp.float32)], axis=1)   # (B,4)
    coefs = jnp.broadcast_to(coefs[:, None, :], (B, P, 4)).reshape(B * P, 4)

    # ---- sinusoidal timestep embedding, pre-broadcast per pixel ----
    half = CT // 2
    freqs = jnp.exp(-jnp.log(10000.0) * jnp.arange(half, dtype=jnp.float32) / half)
    args = timesteps.astype(jnp.float32)[:, None] * freqs[None, :]
    temb = jnp.concatenate([jnp.cos(args), jnp.sin(args)], axis=-1)    # (B, CT)
    temb = jnp.broadcast_to(temb[:, None, :], (B, P, CT)).reshape(B * P, CT)

    # ---- pack the K=32 weights / biases into two slabs (fewer DMAs) ----
    w_slab = jnp.concatenate(
        [params["txt_w"], params["unet_w_t"], params["unet_wq"], params["unet_wk"],
         params["unet_wv"], params["unet_wo"], params["unet_w_out"]],
        axis=1)                                                         # (32, 196)
    b_slab = jnp.concatenate(
        [params["txt_b"], params["unet_b_t"], params["unet_b_in"],
         params["unet_b_out"],
         jnp.zeros((1, _B_SLAB_N - 3 * C_UNET - LAT_C), jnp.float32)],
        axis=1)                                                         # (1, 128)

    return ip2p_fused(xe, xo, tok_all, pmask, temb, noise, eps, coefs,
                      params["vae_w"], params["vae_b"], params["unet_w_in"],
                      w_slab, b_slab)


def instruct_pix2pix_forward(params, original_img, edited_img, dino_image=None,
                             input_ids=None, attention_mask=None, *, rng):
    # dino_image and attention_mask are accepted but unused, as in the reference.
    return _forward_impl(params, original_img, edited_img, input_ids, rng)


# --------------------------------- main -----------------------------------
if __name__ == "__main__":
    key = jax.random.PRNGKey(0)
    k_param, k_img1, k_img2, k_ids, k_fwd = jax.random.split(key, 5)
    params = init_params(k_param)

    original_img = jax.random.normal(k_img1, (B, IMG_C, IMG_H, IMG_W), jnp.float32)
    edited_img = jax.random.normal(k_img2, (B, IMG_C, IMG_H, IMG_W), jnp.float32)
    dino_image = jnp.zeros((B, IMG_C, IMG_H, IMG_W), jnp.float32)   # unused by forward
    input_ids = jax.random.randint(k_ids, (B, SEQ), 0, VOCAB, dtype=jnp.int32)

    loss = instruct_pix2pix_forward(params, original_img, edited_img,
                                    dino_image, input_ids, rng=k_fwd)
    jax.block_until_ready(loss)
    # TODO(synk): pretrained SD/CLIP weights + tokenizer are replaced by small
    # deterministic stand-ins; torch RNG replaced with jax.random.
    print("KERNEL_OK")
</pallas_src>

<mosaic_0001>
module attributes {stable_mosaic.version = 11 : i64} {
  func.func @_ip2p_fused_kernel(%arg0: memref<128x12xbf16, #tpu.memory_space<vmem>>, %arg1: memref<128x12xbf16, #tpu.memory_space<vmem>>, %arg2: memref<32x32xf32, #tpu.memory_space<vmem>>, %arg3: memref<16x1xf32, #tpu.memory_space<vmem>>, %arg4: memref<128x32xf32, #tpu.memory_space<vmem>>, %arg5: memref<128x4xf32, #tpu.memory_space<vmem>>, %arg6: memref<128x4xf32, #tpu.memory_space<vmem>>, %arg7: memref<128x4xf32, #tpu.memory_space<vmem>>, %arg8: memref<12x8xbf16, #tpu.memory_space<vmem>>, %arg9: memref<1x8xf32, #tpu.memory_space<vmem>>, %arg10: memref<8x32xf32, #tpu.memory_space<vmem>>, %arg11: memref<32x196xf32, #tpu.memory_space<vmem>>, %arg12: memref<1x128xf32, #tpu.memory_space<vmem>>, %arg13: memref<1x1xf32, #tpu.memory_space<smem>>) attributes {dimension_semantics = [], scalar_prefetch = 0 : i64, scratch_operands = 0 : i64, tpu.core_type = #tpu.core_type<tc>} {
    %c0 = arith.constant 0 : index
    %c0_0 = arith.constant 0 : index
    %0 = vector.load %arg11[%c0, %c0_0] : memref<32x196xf32, #tpu.memory_space<vmem>>, vector<32x196xf32>
    %c0_1 = arith.constant 0 : index
    %c0_2 = arith.constant 0 : index
    %1 = vector.load %arg12[%c0_1, %c0_2] : memref<1x128xf32, #tpu.memory_space<vmem>>, vector<1x128xf32>
    %2 = vector.extract_strided_slice %0 {offsets = [0, 0], sizes = [32, 32], strides = [1, 1]} : vector<32x196xf32> to vector<32x32xf32>
    %3 = vector.extract_strided_slice %0 {offsets = [0, 32], sizes = [32, 32], strides = [1, 1]} : vector<32x196xf32> to vector<32x32xf32>
    %4 = vector.extract_strided_slice %0 {offsets = [0, 64], sizes = [32, 32], strides = [1, 1]} : vector<32x196xf32> to vector<32x32xf32>
    %5 = vector.extract_strided_slice %0 {offsets = [0, 96], sizes = [32, 32], strides = [1, 1]} : vector<32x196xf32> to vector<32x32xf32>
    %6 = vector.extract_strided_slice %0 {offsets = [0, 128], sizes = [32, 32], strides = [1, 1]} : vector<32x196xf32> to vector<32x32xf32>
    %7 = vector.extract_strided_slice %0 {offsets = [0, 160], sizes = [32, 32], strides = [1, 1]} : vector<32x196xf32> to vector<32x32xf32>
    %8 = vector.extract_strided_slice %0 {offsets = [0, 192], sizes = [32, 4], strides = [1, 1]} : vector<32x196xf32> to vector<32x4xf32>
    %9 = vector.extract_strided_slice %1 {offsets = [0, 0], sizes = [1, 32], strides = [1, 1]} : vector<1x128xf32> to vector<1x32xf32>
    %10 = vector.extract_strided_slice %1 {offsets = [0, 32], sizes = [1, 32], strides = [1, 1]} : vector<1x128xf32> to vector<1x32xf32>
    %11 = vector.extract_strided_slice %1 {offsets = [0, 64], sizes = [1, 32], strides = [1, 1]} : vector<1x128xf32> to vector<1x32xf32>
    %12 = vector.extract_strided_slice %1 {offsets = [0, 96], sizes = [1, 4], strides = [1, 1]} : vector<1x128xf32> to vector<1x4xf32>
    %c0_3 = arith.constant 0 : index
    %c0_4 = arith.constant 0 : index
    %13 = vector.load %arg2[%c0_3, %c0_4] : memref<32x32xf32, #tpu.memory_space<vmem>>, vector<32x32xf32>
    %cst = arith.constant dense<0.000000e+00> : vector<32x32xf32>
    %14 = tpu.matmul %13, %2, %cst {dimension_numbers = #tpu.dot_dimension_numbers<[1], [0], [0], [1], [0, 0, 1, 1], [], []>} : vector<32x32xf32>, vector<32x32xf32>, vector<32x32xf32> -> vector<32x32xf32>
    %15 = vector.broadcast %9 : vector<1x32xf32> to vector<32x32xf32>
    %16 = arith.addf %14, %15 : vector<32x32xf32>
    %17 = vector.extract_strided_slice %16 {offsets = [0, 0], sizes = [16, 32], strides = [1, 1]} : vector<32x32xf32> to vector<16x32xf32>
    %18 = vector.extract_strided_slice %16 {offsets = [16, 0], sizes = [16, 32], strides = [1, 1]} : vector<32x32xf32> to vector<16x32xf32>
    %c0_5 = arith.constant 0 : index
    %c0_6 = arith.constant 0 : index
    %19 = vector.load %arg3[%c0_5, %c0_6] : memref<16x1xf32, #tpu.memory_space<vmem>>, vector<16x1xf32>
    %cst_7 = arith.constant 0.000000e+00 : f32
    %20 = vector.broadcast %cst_7 : f32 to vector<16x1xf32>
    %21 = arith.cmpf one, %19, %20 : vector<16x1xf32>
    %22 = vector.shape_cast %21 : vector<16x1xi1> to vector<16x1xi1>
    %23 = vector.broadcast %22 : vector<16x1xi1> to vector<16x32xi1>
    %24 = arith.select %23, %18, %17 : vector<16x32xi1>, vector<16x32xf32>
    %c0_8 = arith.constant 0 : index
    %c0_9 = arith.constant 0 : index
    %25 = vector.load %arg8[%c0_8, %c0_9] : memref<12x8xbf16, #tpu.memory_space<vmem>>, vector<12x8xbf16>
    %c0_10 = arith.constant 0 : index
    %c0_11 = arith.constant 0 : index
    %26 = vector.load %arg9[%c0_10, %c0_11] : memref<1x8xf32, #tpu.memory_space<vmem>>, vector<1x8xf32>
    %c0_12 = arith.constant 0 : index
    %c0_13 = arith.constant 0 : index
    %27 = vector.load %arg0[%c0_12, %c0_13] : memref<128x12xbf16, #tpu.memory_space<vmem>>, vector<128x12xbf16>
    %cst_14 = arith.constant dense<0.000000e+00> : vector<128x8xf32>
    %28 = tpu.matmul %27, %25, %cst_14 {dimension_numbers = #tpu.dot_dimension_numbers<[1], [0], [0], [1], [0, 0, 1, 1], [], []>} : vector<128x12xbf16>, vector<12x8xbf16>, vector<128x8xf32> -> vector<128x8xf32>
    %29 = vector.broadcast %26 : vector<1x8xf32> to vector<128x8xf32>
    %30 = arith.addf %28, %29 : vector<128x8xf32>
    %c0_15 = arith.constant 0 : index
    %c0_16 = arith.constant 0 : index
    %31 = vector.load %arg1[%c0_15, %c0_16] : memref<128x12xbf16, #tpu.memory_space<vmem>>, vector<128x12xbf16>
    %cst_17 = arith.constant dense<0.000000e+00> : vector<128x8xf32>
    %32 = tpu.matmul %31, %25, %cst_17 {dimension_numbers = #tpu.dot_dimension_numbers<[1], [0], [0], [1], [0, 0, 1, 1], [], []>} : vector<128x12xbf16>, vector<12x8xbf16>, vector<128x8xf32> -> vector<128x8xf32>
    %33 = vector.broadcast %26 : vector<1x8xf32> to vector<128x8xf32>
    %34 = arith.addf %32, %33 : vector<128x8xf32>
    %35 = vector.extract_strided_slice %30 {offsets = [0, 0], sizes = [128, 4], strides = [1, 1]} : vector<128x8xf32> to vector<128x4xf32>
    %36 = vector.extract_strided_slice %30 {offsets = [0, 4], sizes = [128, 4], strides = [1, 1]} : vector<128x8xf32> to vector<128x4xf32>
    %37 = vector.extract_strided_slice %34 {offsets = [0, 0], sizes = [128, 4], strides = [1, 1]} : vector<128x8xf32> to vector<128x4xf32>
    %cst_18 = arith.constant -3.000000e+01 : f32
    %cst_19 = arith.constant 2.000000e+01 : f32
    %38 = vector.broadcast %cst_18 : f32 to vector<128x4xf32>
    %39 = arith.maximumf %38, %36 : vector<128x4xf32>
    %40 = vector.broadcast %cst_19 : f32 to vector<128x4xf32>
    %41 = arith.minimumf %40, %39 : vector<128x4xf32>
    %cst_20 = arith.constant 5.000000e-01 : f32
    %42 = vector.broadcast %cst_20 : f32 to vector<128x4xf32>
    %43 = arith.mulf %42, %41 : vector<128x4xf32>
    %44 = math.exp %43 : vector<128x4xf32>
    %c0_21 = arith.constant 0 : index
    %c0_22 = arith.constant 0 : index
    %45 = vector.load %arg6[%c0_21, %c0_22] : memref<128x4xf32, #tpu.memory_space<vmem>>, vector<128x4xf32>
    %46 = arith.mulf %44, %45 : vector<128x4xf32>
    %47 = arith.addf %35, %46 : vector<128x4xf32>
    %cst_23 = arith.constant 1.821500e-01 : f32
    %48 = vector.broadcast %cst_23 : f32 to vector<128x4xf32>
    %49 = arith.mulf %47, %48 : vector<128x4xf32>
    %c0_24 = arith.constant 0 : index
    %c0_25 = arith.constant 0 : index
    %50 = vector.load %arg7[%c0_24, %c0_25] : memref<128x4xf32, #tpu.memory_space<vmem>>, vector<128x4xf32>
    %c0_26 = arith.constant 0 : index
    %c0_27 = arith.constant 0 : index
    %51 = vector.load %arg5[%c0_26, %c0_27] : memref<128x4xf32, #tpu.memory_space<vmem>>, vector<128x4xf32>
    %52 = vector.extract_strided_slice %50 {offsets = [0, 0], sizes = [128, 1], strides = [1, 1]} : vector<128x4xf32> to vector<128x1xf32>
    %53 = vector.broadcast %52 : vector<128x1xf32> to vector<128x4xf32>
    %54 = arith.mulf %53, %49 : vector<128x4xf32>
    %55 = vector.extract_strided_slice %50 {offsets = [0, 1], sizes = [128, 1], strides = [1, 1]} : vector<128x4xf32> to vector<128x1xf32>
    %56 = vector.broadcast %55 : vector<128x1xf32> to vector<128x4xf32>
    %57 = arith.mulf %56, %51 : vector<128x4xf32>
    %58 = arith.addf %54, %57 : vector<128x4xf32>
    %59 = vector.extract_strided_slice %50 {offsets = [0, 2], sizes = [128, 1], strides = [1, 1]} : vector<128x4xf32> to vector<128x1xf32>
    %60 = vector.broadcast %59 : vector<128x1xf32> to vector<128x4xf32>
    %61 = arith.mulf %60, %37 : vector<128x4xf32>
    %c0_28 = arith.constant 0 : index
    %c0_29 = arith.constant 0 : index
    %62 = vector.load %arg10[%c0_28, %c0_29] : memref<8x32xf32, #tpu.memory_space<vmem>>, vector<8x32xf32>
    %63 = vector.extract_strided_slice %62 {offsets = [0, 0], sizes = [4, 32], strides = [1, 1]} : vector<8x32xf32> to vector<4x32xf32>
    %cst_30 = arith.constant dense<0.000000e+00> : vector<128x32xf32>
    %64 = tpu.matmul %58, %63, %cst_30 {dimension_numbers = #tpu.dot_dimension_numbers<[1], [0], [0], [1], [0, 0, 1, 1], [], []>} : vector<128x4xf32>, vector<4x32xf32>, vector<128x32xf32> -> vector<128x32xf32>
    %65 = vector.extract_strided_slice %62 {offsets = [4, 0], sizes = [4, 32], strides = [1, 1]} : vector<8x32xf32> to vector<4x32xf32>
    %cst_31 = arith.constant dense<0.000000e+00> : vector<128x32xf32>
    %66 = tpu.matmul %61, %65, %cst_31 {dimension_numbers = #tpu.dot_dimension_numbers<[1], [0], [0], [1], [0, 0, 1, 1], [], []>} : vector<128x4xf32>, vector<4x32xf32>, vector<128x32xf32> -> vector<128x32xf32>
    %67 = arith.addf %64, %66 : vector<128x32xf32>
    %68 = vector.broadcast %11 : vector<1x32xf32> to vector<128x32xf32>
    %69 = arith.addf %67, %68 : vector<128x32xf32>
    %c0_32 = arith.constant 0 : index
    %c0_33 = arith.constant 0 : index
    %70 = vector.load %arg4[%c0_32, %c0_33] : memref<128x32xf32, #tpu.memory_space<vmem>>, vector<128x32xf32>
    %cst_34 = arith.constant dense<0.000000e+00> : vector<128x32xf32>
    %71 = tpu.matmul %70, %3, %cst_34 {dimension_numbers = #tpu.dot_dimension_numbers<[1], [0], [0], [1], [0, 0, 1, 1], [], []>} : vector<128x32xf32>, vector<32x32xf32>, vector<128x32xf32> -> vector<128x32xf32>
    %72 = arith.addf %69, %71 : vector<128x32xf32>
    %73 = vector.broadcast %10 : vector<1x32xf32> to vector<128x32xf32>
    %74 = arith.addf %72, %73 : vector<128x32xf32>
    %cst_35 = arith.constant dense<0.000000e+00> : vector<128x32xf32>
    %75 = tpu.matmul %74, %4, %cst_35 {dimension_numbers = #tpu.dot_dimension_numbers<[1], [0], [0], [1], [0, 0, 1, 1], [], []>} : vector<128x32xf32>, vector<32x32xf32>, vector<128x32xf32> -> vector<128x32xf32>
    %76 = vector.shape_cast %75 : vector<128x32xf32> to vector<2x64x32xf32>
    %cst_36 = arith.constant dense<0.000000e+00> : vector<16x32xf32>
    %77 = tpu.matmul %24, %5, %cst_36 {dimension_numbers = #tpu.dot_dimension_numbers<[1], [0], [0], [1], [0, 0, 1, 1], [], []>} : vector<16x32xf32>, vector<32x32xf32>, vector<16x32xf32> -> vector<16x32xf32>
    %78 = vector.shape_cast %77 : vector<16x32xf32> to vector<2x8x32xf32>
    %cst_37 = arith.constant dense<0.000000e+00> : vector<16x32xf32>
    %79 = tpu.matmul %24, %6, %cst_37 {dimension_numbers = #tpu.dot_dimension_numbers<[1], [0], [0], [1], [0, 0, 1, 1], [], []>} : vector<16x32xf32>, vector<32x32xf32>, vector<16x32xf32> -> vector<16x32xf32>
    %80 = vector.shape_cast %79 : vector<16x32xf32> to vector<2x8x32xf32>
    "tpu.trace_start"() <{level = 10 : i32, message = "bpd,bsd->bps"}> : () -> ()
    %cst_38 = arith.constant dense<0.000000e+00> : vector<2x64x8xf32>
    %81 = tpu.matmul %76, %78, %cst_38 {dimension_numbers = #tpu.dot_dimension_numbers<[2], [2], [1], [1], [0, 0, 0, 1, 1, 1], [0], [0]>} : vector<2x64x32xf32>, vector<2x8x32xf32>, vector<2x64x8xf32> -> vector<2x64x8xf32>
    "tpu.trace_stop"() : () -> ()
    %cst_39 = arith.constant 0.176776692 : f32
    %82 = vector.broadcast %cst_39 : f32 to vector<2x64x8xf32>
    %83 = arith.mulf %81, %82 : vector<2x64x8xf32>
    %cst_40 = arith.constant dense<0xFF800000> : vector<2x64xf32>
    %84 = vector.multi_reduction <maximumf>, %83, %cst_40 [2] : vector<2x64x8xf32> to vector<2x64xf32>
    %85 = vector.shape_cast %84 : vector<2x64xf32> to vector<2x64x1xf32>
    %86 = vector.broadcast %85 : vector<2x64x1xf32> to vector<2x64x8xf32>
    %87 = arith.subf %83, %86 : vector<2x64x8xf32>
    %88 = math.exp %87 : vector<2x64x8xf32>
    %cst_41 = arith.constant dense<0.000000e+00> : vector<2x64xf32>
    %89 = vector.multi_reduction <add>, %88, %cst_41 [2] : vector<2x64x8xf32> to vector<2x64xf32>
    %90 = vector.shape_cast %89 : vector<2x64xf32> to vector<2x64x1xf32>
    %91 = tpu.reciprocal %90 {approx = true} : vector<2x64x1xf32> -> vector<2x64x1xf32>
    %92 = vector.broadcast %91 : vector<2x64x1xf32> to vector<2x64x8xf32>
    %93 = arith.mulf %88, %92 : vector<2x64x8xf32>
    "tpu.trace_start"() <{level = 10 : i32, message = "bps,bsd->bpd"}> : () -> ()
    %cst_42 = arith.constant dense<0.000000e+00> : vector<2x64x32xf32>
    %94 = tpu.matmul %93, %80, %cst_42 {dimension_numbers = #tpu.dot_dimension_numbers<[2], [1], [1], [2], [0, 0, 0, 1, 1, 2], [0], [0]>} : vector<2x64x8xf32>, vector<2x8x32xf32>, vector<2x64x32xf32> -> vector<2x64x32xf32>
    "tpu.trace_stop"() : () -> ()
    %95 = vector.shape_cast %94 : vector<2x64x32xf32> to vector<128x32xf32>
    %cst_43 = arith.constant dense<0.000000e+00> : vector<128x32xf32>
    %96 = tpu.matmul %95, %7, %cst_43 {dimension_numbers = #tpu.dot_dimension_numbers<[1], [0], [0], [1], [0, 0, 1, 1], [], []>} : vector<128x32xf32>, vector<32x32xf32>, vector<128x32xf32> -> vector<128x32xf32>
    %97 = arith.addf %74, %96 : vector<128x32xf32>
    %cst_44 = arith.constant dense<0.000000e+00> : vector<128x4xf32>
    %98 = tpu.matmul %97, %8, %cst_44 {dimension_numbers = #tpu.dot_dimension_numbers<[1], [0], [0], [1], [0, 0, 1, 1], [], []>} : vector<128x32xf32>, vector<32x4xf32>, vector<128x4xf32> -> vector<128x4xf32>
    %99 = vector.broadcast %12 : vector<1x4xf32> to vector<128x4xf32>
    %100 = arith.addf %98, %99 : vector<128x4xf32>
    %101 = arith.subf %100, %51 : vector<128x4xf32>
    %102 = arith.mulf %101, %101 : vector<128x4xf32>
    %103 = vector.shape_cast %102 : vector<128x4xf32> to vector<1x128x4xf32>
    %cst_45 = arith.constant dense<0.000000e+00> : vector<1xf32>
    %104 = vector.multi_reduction <add>, %103, %cst_45 [1, 2] : vector<1x128x4xf32> to vector<1xf32>
    %105 = vector.shape_cast %104 : vector<1xf32> to vector<1x1x1xf32>
    %106 = vector.extract %105[0, 0, 0] : f32 from vector<1x1x1xf32>
    %cst_46 = arith.constant 5.120000e+02 : f32
    %107 = arith.divf %106, %cst_46 : f32
    %cst_47 = arith.constant 1.000000e+00 : f32
    %108 = arith.mulf %107, %cst_47 : f32
    %c0_48 = arith.constant 0 : index
    %c0_49 = arith.constant 0 : index
    %109 = memref.load %arg13[%c0_48, %c0_49] : memref<1x1xf32, #tpu.memory_space<smem>>
    memref.store %108, %arg13[%c0_48, %c0_49] : memref<1x1xf32, #tpu.memory_space<smem>>
    return
  }
}

</mosaic_0001>

<llo_original>
// kernel: _forward_impl.3
$region0: #{_forward_impl.3}
  #allocation0 [shape = 'u32[]', space=smem, size = 0x4, offset = 0x4, fixed_abs, tag = 'smem constant byte address 0x4 - core index']
  #allocation1 [shape = 'u32[72,128]{1,0:T(1,128)}', space=vmem, size = 0x9000, scoped, tag = 'internal scratch']
  %s0 = inlined_call_operand.vmem [shape: bf16[128,12], index: 0, kind: input, shape index: {}]
  %s1 = inlined_call_operand.vmem [shape: bf16[128,12], index: 1, kind: input, shape index: {}]
  %s2 = inlined_call_operand.vmem [shape: f32[32,32], index: 2, kind: input, shape index: {}]
  %s3 = inlined_call_operand.vmem [shape: f32[16,1], index: 3, kind: input, shape index: {}]
  %s4 = inlined_call_operand.vmem [shape: f32[128,32], index: 4, kind: input, shape index: {}]
  %s5 = inlined_call_operand.vmem [shape: f32[128,4], index: 5, kind: input, shape index: {}]
  %s6 = inlined_call_operand.vmem [shape: f32[128,4], index: 6, kind: input, shape index: {}]
  %s7 = inlined_call_operand.vmem [shape: f32[128,4], index: 7, kind: input, shape index: {}]
  %s8 = inlined_call_operand.vmem [shape: bf16[12,8], index: 8, kind: input, shape index: {}]
  %s9 = inlined_call_operand.vmem [shape: f32[1,8], index: 9, kind: input, shape index: {}]
  %s10 = inlined_call_operand.vmem [shape: f32[8,32], index: 10, kind: input, shape index: {}]
  %s11 = inlined_call_operand.vmem [shape: f32[32,196], index: 11, kind: input, shape index: {}]
  %s12 = inlined_call_operand.vmem [shape: f32[1,128], index: 12, kind: input, shape index: {}]
  %s13 = inlined_call_operand.hbm [shape: f32[1,1], index: 13, kind: output, shape index: {}]
  %s14 = sld [smem:[#allocation0]]
  $region62: #{_forward_impl.3} parent=0
    _
  %s16 = ssub.s32 1, %s14
  %s17 = scalar_select 0, %s16, %s14
  $region1: #{_forward_impl.3} parent=0
    #allocation2 [shape = 'u8[512]{0}', space=smem, size = 0x200, scoped, tag = 'output window, operand 0, single buffered']
    #allocation3 [shape = 's32[1]{0}', space=sflag, size = 0x4, scoped, tag = 'scoped memory for _forward_impl.3']
    %18 = vsyncpa [#allocation3], 0
    // Predicated region
    $region2: #{_forward_impl.3} parent=1 // pred_check
      _
    $region3: #{_forward_impl.3} parent=1 // pred_check_branch
      %20 = sbr.rel (0) target = $region5
    $region4: #{_forward_impl.3} parent=1 // pred_region
      _
    $region5: #{_forward_impl.3} parent=1 // pred_fallthru
      _
    // Predicated region
    $region6: #{_forward_impl.3} parent=1 // pred_check
      _
    $region7: #{_forward_impl.3} parent=1 // pred_check_branch
      %22 = sbr.rel (0) target = $region9
    $region8: #{_forward_impl.3} parent=1 // pred_region
      _
    $region9: #{_forward_impl.3} parent=1 // pred_fallthru
      _
    // Predicated region
    $region10: #{_forward_impl.3} parent=1 // pred_check
      _
    $region11: #{_forward_impl.3} parent=1 // pred_check_branch
      %24 = sbr.rel (0) target = $region13
    $region12: #{_forward_impl.3} parent=1 // pred_region
      _
    $region13: #{_forward_impl.3} parent=1 // pred_fallthru
      _
    // Predicated region
    $region14: #{_forward_impl.3} parent=1 // pred_check
      _
    $region15: #{_forward_impl.3} parent=1 // pred_check_branch
      %26 = sbr.rel (0) target = $region17
    $region16: #{_forward_impl.3} parent=1 // pred_region
      _
    $region17: #{_forward_impl.3} parent=1 // pred_fallthru
      _
    // Predicated region
    $region18: #{_forward_impl.3} parent=1 // pred_check
      _
    $region19: #{_forward_impl.3} parent=1 // pred_check_branch
      %28 = sbr.rel (0) target = $region21
    $region20: #{_forward_impl.3} parent=1 // pred_region
      _
    $region21: #{_forward_impl.3} parent=1 // pred_fallthru
      _
    // Predicated region
    $region22: #{_forward_impl.3} parent=1 // pred_check
      _
    $region23: #{_forward_impl.3} parent=1 // pred_check_branch
      %30 = sbr.rel (0) target = $region25
    $region24: #{_forward_impl.3} parent=1 // pred_region
      _
    $region25: #{_forward_impl.3} parent=1 // pred_fallthru
      _
    // Predicated region
    $region26: #{_forward_impl.3} parent=1 // pred_check
      _
    $region27: #{_forward_impl.3} parent=1 // pred_check_branch
      %32 = sbr.rel (0) target = $region29
    $region28: #{_forward_impl.3} parent=1 // pred_region
      _
    $region29: #{_forward_impl.3} parent=1 // pred_fallthru
      _
    // Predicated region
    $region30: #{_forward_impl.3} parent=1 // pred_check
      _
    $region31: #{_forward_impl.3} parent=1 // pred_check_branch
      %34 = sbr.rel (0) target = $region33
    $region32: #{_forward_impl.3} parent=1 // pred_region
      _
    $region33: #{_forward_impl.3} parent=1 // pred_fallthru
      _
    // Predicated region
    $region34: #{_forward_impl.3} parent=1 // pred_check
      _
    $region35: #{_forward_impl.3} parent=1 // pred_check_branch
      %36 = sbr.rel (0) target = $region37
    $region36: #{_forward_impl.3} parent=1 // pred_region
      _
    $region37: #{_forward_impl.3} parent=1 // pred_fallthru
      _
    // Predicated region
    $region38: #{_forward_impl.3} parent=1 // pred_check
      _
    $region39: #{_forward_impl.3} parent=1 // pred_check_branch
      %38 = sbr.rel (0) target = $region41
    $region40: #{_forward_impl.3} parent=1 // pred_region
      _
    $region41: #{_forward_impl.3} parent=1 // pred_fallthru
      _
    // Predicated region
    $region42: #{_forward_impl.3} parent=1 // pred_check
      _
    $region43: #{_forward_impl.3} parent=1 // pred_check_branch
      %40 = sbr.rel (0) target = $region45
    $region44: #{_forward_impl.3} parent=1 // pred_region
      _
    $region45: #{_forward_impl.3} parent=1 // pred_fallthru
      _
    // Predicated region
    $region46: #{_forward_impl.3} parent=1 // pred_check
      _
    $region47: #{_forward_impl.3} parent=1 // pred_check_branch
      %42 = sbr.rel (0) target = $region49
    $region48: #{_forward_impl.3} parent=1 // pred_region
      _
    $region49: #{_forward_impl.3} parent=1 // pred_fallthru
      _
    // Predicated region
    $region50: #{_forward_impl.3} parent=1 // pred_check
      _
    $region51: #{_forward_impl.3} parent=1 // pred_check_branch
      %44 = sbr.rel (0) target = $region53
    $region52: #{_forward_impl.3} parent=1 // pred_region
      _
    $region53: #{_forward_impl.3} parent=1 // pred_fallthru
      _
    %v46 = vld [vmem:[%s11] sm:$0xff]
    %v47 = vld [vmem:[%s11 + $0x8] sm:$0xff]
    %v48 = vld [vmem:[%s11 + $0x10] sm:$0xff]
    %v49 = vld [vmem:[%s11 + $0x18] sm:$0xff]
    %v50 = vld [vmem:[%s11 + $0x20] sm:$0xff]
    %v51 = vld [vmem:[%s11 + $0x28] sm:$0xff]
    %v52 = vld [vmem:[%s11 + $0x30] sm:$0xff]
    %v53 = vld [vmem:[%s11 + $0x38] sm:$0xff]
    %v54 = vld [vmem:[%s12] sm:$0x1]
    %v55 = vld [vmem:[%s2] sm:$0xff]
    %v56 = vld [vmem:[%s2 + $0x8] sm:$0xff]
    %v57 = vld [vmem:[%s2 + $0x10] sm:$0xff]
    %v58 = vld [vmem:[%s2 + $0x18] sm:$0xff]
    %v60 = vperm.slane %v54, 0
    %vm62 = vcmask 261120
    %v64 = vsel %vm62, %v55, 0
    %v67 = vsel %vm62, %v56, 0
    %v70 = vsel %vm62, %v57, 0
    %v73 = vsel %vm62, %v58, 0
    %75 = vmatpush.msra.mxu0 0.0
    %76 = vmatpush.msra.mxu0 0.0
    %77 = vmatpush.msra.mxu0 0.0
    %78 = vmatpush.msra.mxu0 0.0
    %79 = vmatpush.msra.mxu0 0.0
    %80 = vmatpush.msra.mxu0 0.0
    %81 = vmatpush.msra.mxu0 0.0
    %82 = vmatpush.msra.mxu0 0.0
    %83 = vmatpush.msra.mxu0 0.0
    %84 = vmatpush.msra.mxu0 0.0
    %85 = vmatpush.msra.mxu0 0.0
    %86 = vmatpush.msra.mxu0 0.0
    %87 = vmatpush.msra.mxu0 %v52
    %88 = vmatpush.msra.mxu0 %v50
    %89 = vmatpush.msra.mxu0 %v48
    %90 = vmatpush.msra.mxu0 %v46
    %91 = vmatmul.f32.gmra.mxu0 %v64
    %v92 = vpop.f32.mrf.mxu0
    %v93 = vadd.f32 %v60, %v92
    %94 = vmatmul.f32.gmra.mxu0 %v67
    %v95 = vpop.f32.mrf.mxu0
    %v96 = vadd.f32 %v60, %v95
    %97 = vmatmul.f32.gmra.mxu0 %v70
    %v98 = vpop.f32.mrf.mxu0
    %v99 = vadd.f32 %v60, %v98
    %100 = vmatmul.f32.gmra.mxu0 %v73
    %v101 = vpop.f32.mrf.mxu0
    %v102 = vadd.f32 %v60, %v101
    %103 = vdwg.mxu0
    %v104 = vld [vmem:[%s3] sm:$0xff]
    %v105 = vld [vmem:[%s3 + $0x8] sm:$0xff]
    %vm106 = vcmp.ne.f32.partialorder %v104, 0.0
    %vm107 = vcmp.ne.f32.partialorder %v105, 0.0
    %v108 = vsel %vm106, 1, 0
    %v109 = vsel %vm107, 1, 0
    %110 = vset.pattern.permute.xlu0 0
    %111 = vperm.xlu0 %110, %v108
    %v112 = vpop.permute.xlu0 %111
    %113 = vset.pattern.permute.xlu0 0
    %114 = vperm.xlu0 %113, %v109
    %v115 = vpop.permute.xlu0 %114
    %vm116 = vcmp.eq.s32.totalorder %v112, 1
    %vm117 = vcmp.eq.s32.totalorder %v115, 1
    %v118 = vsel %vm116, %v99, %v93
    %v119 = vsel %vm117, %v102, %v96
    %v120 = vld [vmem:[%s8] sm:$0xf]
    %v121 = vld [vmem:[%s8 + $0x4] sm:$0x3]
    %v122 = vld [vmem:[%s9] sm:$0x1]
    %v123 = vld [vmem:[%s0] sm:$0xf]
    %v124 = vld [vmem:[%s0 + $0x4] sm:$0xf]
    %v125 = vld [vmem:[%s0 + $0x8] sm:$0xf]
    %v126 = vld [vmem:[%s0 + $0xc] sm:$0xf]
    %v127 = vld [vmem:[%s0 + $0x10] sm:$0xf]
    %v128 = vld [vmem:[%s0 + $0x14] sm:$0xf]
    %v129 = vld [vmem:[%s0 + $0x18] sm:$0xf]
    %v130 = vld [vmem:[%s0 + $0x1c] sm:$0xf]
    %v131 = vld [vmem:[%s0 + $0x20] sm:$0xf]
    %v132 = vld [vmem:[%s0 + $0x24] sm:$0xf]
    %v133 = vld [vmem:[%s0 + $0x28] sm:$0xf]
    %v134 = vld [vmem:[%s0 + $0x2c] sm:$0xf]
    %v135 = vld [vmem:[%s0 + $0x30] sm:$0xf]
    %v136 = vld [vmem:[%s0 + $0x34] sm:$0xf]
    %v137 = vld [vmem:[%s0 + $0x38] sm:$0xf]
    %v138 = vld [vmem:[%s0 + $0x3c] sm:$0xf]
    %v140 = vperm.slane %v122, 0
    %v158 = vunpack.c.l.b16 %v123
    %v159 = vunpack.c.l.b16 %v124
    %v160 = vunpack.c.l.b16 %v125
    %v161 = vunpack.c.l.b16 %v126
    %v162 = vunpack.c.l.b16 %v127
    %v163 = vunpack.c.l.b16 %v128
    %v164 = vunpack.c.l.b16 %v129
    %v165 = vunpack.c.l.b16 %v130
    %v166 = vunpack.c.l.b16 %v131
    %v167 = vunpack.c.l.b16 %v132
    %v168 = vunpack.c.l.b16 %v133
    %v169 = vunpack.c.l.b16 %v134
    %v170 = vunpack.c.l.b16 %v135
    %v171 = vunpack.c.l.b16 %v136
    %v172 = vunpack.c.l.b16 %v137
    %v173 = vunpack.c.l.b16 %v138
    %v174 = vpack.c.b16 %v159, %v158
    %v175 = vpack.c.b16 %v161, %v160
    %v176 = vpack.c.b16 %v163, %v162
    %v177 = vpack.c.b16 %v165, %v164
    %v178 = vpack.c.b16 %v167, %v166
    %v179 = vpack.c.b16 %v169, %v168
    %v180 = vpack.c.b16 %v171, %v170
    %v181 = vpack.c.b16 %v173, %v172
    %v184 = vunpack.c.l.b16 %v120
    %v185 = vunpack.c.l.b16 %v121
    %v186 = vpack.c.b16 %v185, %v184
    %vm187 = vcmask 97280
    %v189 = vsel %vm187, %v174, 0
    %v192 = vsel %vm187, %v175, 0
    %v195 = vsel %vm187, %v176, 0
    %v198 = vsel %vm187, %v177, 0
    %v201 = vsel %vm187, %v178, 0
    %v204 = vsel %vm187, %v179, 0
    %v207 = vsel %vm187, %v180, 0
    %v210 = vsel %vm187, %v181, 0
    %vm212 = vcmask 1045504
    %v214 = vsel %vm212, %v186, 0
    %216 = vmatpush.bf16.msra.mxu0 0
    %217 = vmatpush.bf16.msra.mxu0 0
    %218 = vmatpush.bf16.msra.mxu0 0
    %219 = vmatpush.bf16.msra.mxu0 0
    %220 = vmatpush.bf16.msra.mxu0 0
    %221 = vmatpush.bf16.msra.mxu0 0
    %222 = vmatpush.bf16.msra.mxu0 0
    %223 = vmatpush.bf16.msra.mxu0 %v214
    %224 = vmatmul.bf16.gmra.mxu0 %v189
    %v225 = vpop.f32.mrf.mxu0
    %v226 = vadd.f32 %v140, %v225
    %v227 = vpop.f32.mrf.mxu0
    %v228 = vadd.f32 %v140, %v227
    %229 = vmatmul.bf16.gmra.mxu0 %v192
    %v230 = vpop.f32.mrf.mxu0
    %v231 = vadd.f32 %v140, %v230
    %v232 = vpop.f32.mrf.mxu0
    %v233 = vadd.f32 %v140, %v232
    %234 = vmatmul.bf16.gmra.mxu0 %v195
    %v235 = vpop.f32.mrf.mxu0
    %v236 = vadd.f32 %v140, %v235
    %v237 = vpop.f32.mrf.mxu0
    %v238 = vadd.f32 %v140, %v237
    %239 = vmatmul.bf16.gmra.mxu0 %v198
    %v240 = vpop.f32.mrf.mxu0
    %v241 = vadd.f32 %v140, %v240
    %v242 = vpop.f32.mrf.mxu0
    %v243 = vadd.f32 %v140, %v242
    %244 = vmatmul.bf16.gmra.mxu0 %v201
    %v245 = vpop.f32.mrf.mxu0
    %v246 = vadd.f32 %v140, %v245
    %v247 = vpop.f32.mrf.mxu0
    %v248 = vadd.f32 %v140, %v247
    %249 = vmatmul.bf16.gmra.mxu0 %v204
    %v250 = vpop.f32.mrf.mxu0
    %v251 = vadd.f32 %v140, %v250
    %v252 = vpop.f32.mrf.mxu0
    %v253 = vadd.f32 %v140, %v252
    %254 = vmatmul.bf16.gmra.mxu0 %v207
    %v255 = vpop.f32.mrf.mxu0
    %v256 = vadd.f32 %v140, %v255
    %v257 = vpop.f32.mrf.mxu0
    %v258 = vadd.f32 %v140, %v257
    %259 = vmatmul.bf16.gmra.mxu0 %v210
    %v260 = vpop.f32.mrf.mxu0
    %v261 = vadd.f32 %v140, %v260
    %v262 = vpop.f32.mrf.mxu0
    %v263 = vadd.f32 %v140, %v262
    %264 = vdwg.mxu0
    %v265 = vld [vmem:[%s1] sm:$0xf]
    %v266 = vld [vmem:[%s1 + $0x4] sm:$0xf]
    %v267 = vld [vmem:[%s1 + $0x8] sm:$0xf]
    %v268 = vld [vmem:[%s1 + $0xc] sm:$0xf]
    %v269 = vld [vmem:[%s1 + $0x10] sm:$0xf]
    %v270 = vld [vmem:[%s1 + $0x14] sm:$0xf]
    %v271 = vld [vmem:[%s1 + $0x18] sm:$0xf]
    %v272 = vld [vmem:[%s1 + $0x1c] sm:$0xf]
    %v273 = vld [vmem:[%s1 + $0x20] sm:$0xf]
    %v274 = vld [vmem:[%s1 + $0x24] sm:$0xf]
    %v275 = vld [vmem:[%s1 + $0x28] sm:$0xf]
    %v276 = vld [vmem:[%s1 + $0x2c] sm:$0xf]
    %v277 = vld [vmem:[%s1 + $0x30] sm:$0xf]
    %v278 = vld [vmem:[%s1 + $0x34] sm:$0xf]
    %v279 = vld [vmem:[%s1 + $0x38] sm:$0xf]
    %v280 = vld [vmem:[%s1 + $0x3c] sm:$0xf]
    %v297 = vunpack.c.l.b16 %v265
    %v298 = vunpack.c.l.b16 %v266
    %v299 = vunpack.c.l.b16 %v267
    %v300 = vunpack.c.l.b16 %v268
    %v301 = vunpack.c.l.b16 %v269
    %v302 = vunpack.c.l.b16 %v270
    %v303 = vunpack.c.l.b16 %v271
    %v304 = vunpack.c.l.b16 %v272
    %v305 = vunpack.c.l.b16 %v273
    %v306 = vunpack.c.l.b16 %v274
    %v307 = vunpack.c.l.b16 %v275
    %v308 = vunpack.c.l.b16 %v276
    %v309 = vunpack.c.l.b16 %v277
    %v310 = vunpack.c.l.b16 %v278
    %v311 = vunpack.c.l.b16 %v279
    %v312 = vunpack.c.l.b16 %v280
    %v313 = vpack.c.b16 %v298, %v297
    %v314 = vpack.c.b16 %v300, %v299
    %v315 = vpack.c.b16 %v302, %v301
    %v316 = vpack.c.b16 %v304, %v303
    %v317 = vpack.c.b16 %v306, %v305
    %v318 = vpack.c.b16 %v308, %v307
    %v319 = vpack.c.b16 %v310, %v309
    %v320 = vpack.c.b16 %v312, %v311
    %v322 = vsel %vm187, %v313, 0
    %v325 = vsel %vm187, %v314, 0
    %v328 = vsel %vm187, %v315, 0
    %v331 = vsel %vm187, %v316, 0
    %v334 = vsel %vm187, %v317, 0
    %v337 = vsel %vm187, %v318, 0
    %v340 = vsel %vm187, %v319, 0
    %v343 = vsel %vm187, %v320, 0
    %345 = vmatpush.bf16.msra.mxu0 0
    %346 = vmatpush.bf16.msra.mxu0 0
    %347 = vmatpush.bf16.msra.mxu0 0
    %348 = vmatpush.bf16.msra.mxu0 0
    %349 = vmatpush.bf16.msra.mxu0 0
    %350 = vmatpush.bf16.msra.mxu0 0
    %351 = vmatpush.bf16.msra.mxu0 0
    %352 = vmatpush.bf16.msra.mxu0 %v214
    %353 = vmatmul.bf16.gmra.mxu0 %v322
    %v354 = vpop.f32.mrf.mxu0
    %v355 = vadd.f32 %v140, %v354
    %v356 = vpop.f32.mrf.mxu0
    %v357 = vadd.f32 %v140, %v356
    %358 = vmatmul.bf16.gmra.mxu0 %v325
    %v359 = vpop.f32.mrf.mxu0
    %v360 = vadd.f32 %v140, %v359
    %v361 = vpop.f32.mrf.mxu0
    %v362 = vadd.f32 %v140, %v361
    %363 = vmatmul.bf16.gmra.mxu0 %v328
    %v364 = vpop.f32.mrf.mxu0
    %v365 = vadd.f32 %v140, %v364
    %v366 = vpop.f32.mrf.mxu0
    %v367 = vadd.f32 %v140, %v366
    %368 = vmatmul.bf16.gmra.mxu0 %v331
    %v369 = vpop.f32.mrf.mxu0
    %v370 = vadd.f32 %v140, %v369
    %v371 = vpop.f32.mrf.mxu0
    %v372 = vadd.f32 %v140, %v371
    %373 = vmatmul.bf16.gmra.mxu0 %v334
    %v374 = vpop.f32.mrf.mxu0
    %v375 = vadd.f32 %v140, %v374
    %v376 = vpop.f32.mrf.mxu0
    %v377 = vadd.f32 %v140, %v376
    %378 = vmatmul.bf16.gmra.mxu0 %v337
    %v379 = vpop.f32.mrf.mxu0
    %v380 = vadd.f32 %v140, %v379
    %v381 = vpop.f32.mrf.mxu0
    %v382 = vadd.f32 %v140, %v381
    %383 = vmatmul.bf16.gmra.mxu0 %v340
    %v384 = vpop.f32.mrf.mxu0
    %v385 = vadd.f32 %v140, %v384
    %v386 = vpop.f32.mrf.mxu0
    %v387 = vadd.f32 %v140, %v386
    %388 = vmatmul.bf16.gmra.mxu0 %v343
    %v389 = vpop.f32.mrf.mxu0
    %v390 = vadd.f32 %v140, %v389
    %v391 = vpop.f32.mrf.mxu0
    %v392 = vadd.f32 %v140, %v391
    %393 = vdwg.mxu0
    %v394 = vmax.f32 %v226, -30.0
    %v395 = vmax.f32 %v228, -30.0
    %v396 = vmax.f32 %v231, -30.0
    %v397 = vmax.f32 %v233, -30.0
    %v398 = vmax.f32 %v236, -30.0
    %v399 = vmax.f32 %v238, -30.0
    %v400 = vmax.f32 %v241, -30.0
    %v401 = vmax.f32 %v243, -30.0
    %v402 = vmax.f32 %v246, -30.0
    %v403 = vmax.f32 %v248, -30.0
    %v404 = vmax.f32 %v251, -30.0
    %v405 = vmax.f32 %v253, -30.0
    %v406 = vmax.f32 %v256, -30.0
    %v407 = vmax.f32 %v258, -30.0
    %v408 = vmax.f32 %v261, -30.0
    %v409 = vmax.f32 %v263, -30.0
    %v410 = vmin.f32 %v394, 20.0
    %v411 = vmin.f32 %v395, 20.0
    %v412 = vmin.f32 %v396, 20.0
    %v413 = vmin.f32 %v397, 20.0
    %v414 = vmin.f32 %v398, 20.0
    %v415 = vmin.f32 %v399, 20.0
    %v416 = vmin.f32 %v400, 20.0
    %v417 = vmin.f32 %v401, 20.0
    %v418 = vmin.f32 %v402, 20.0
    %v419 = vmin.f32 %v403, 20.0
    %v420 = vmin.f32 %v404, 20.0
    %v421 = vmin.f32 %v405, 20.0
    %v422 = vmin.f32 %v406, 20.0
    %v423 = vmin.f32 %v407, 20.0
    %v424 = vmin.f32 %v408, 20.0
    %v425 = vmin.f32 %v409, 20.0
    %v426 = vmul.f32 %v410, 0.5
    %v427 = vmul.f32 %v411, 0.5
    %v428 = vmul.f32 %v412, 0.5
    %v429 = vmul.f32 %v413, 0.5
    %v430 = vmul.f32 %v414, 0.5
    %v431 = vmul.f32 %v415, 0.5
    %v432 = vmul.f32 %v416, 0.5
    %v433 = vmul.f32 %v417, 0.5
    %v434 = vmul.f32 %v418, 0.5
    %v435 = vmul.f32 %v419, 0.5
    %v436 = vmul.f32 %v420, 0.5
    %v437 = vmul.f32 %v421, 0.5
    %v438 = vmul.f32 %v422, 0.5
    %v439 = vmul.f32 %v423, 0.5
    %v440 = vmul.f32 %v424, 0.5
    %v441 = vmul.f32 %v425, 0.5
    %v442 = vmul.f32 %v426, 1.442695
    %v443 = vpow.pop %v442
    %v444 = vmul.f32 %v427, 1.442695
    %v445 = vpow.pop %v444
    %v446 = vmul.f32 %v428, 1.442695
    %v447 = vpow.pop %v446
    %v448 = vmul.f32 %v429, 1.442695
    %v449 = vpow.pop %v448
    %v450 = vmul.f32 %v430, 1.442695
    %v451 = vpow.pop %v450
    %v452 = vmul.f32 %v431, 1.442695
    %v453 = vpow.pop %v452
    %v454 = vmul.f32 %v432, 1.442695
    %v455 = vpow.pop %v454
    %v456 = vmul.f32 %v433, 1.442695
    %v457 = vpow.pop %v456
    %v458 = vmul.f32 %v434, 1.442695
    %v459 = vpow.pop %v458
    %v460 = vmul.f32 %v435, 1.442695
    %v461 = vpow.pop %v460
    %v462 = vmul.f32 %v436, 1.442695
    %v463 = vpow.pop %v462
    %v464 = vmul.f32 %v437, 1.442695
    %v465 = vpow.pop %v464
    %v466 = vmul.f32 %v438, 1.442695
    %v467 = vpow.pop %v466
    %v468 = vmul.f32 %v439, 1.442695
    %v469 = vpow.pop %v468
    %v470 = vmul.f32 %v440, 1.442695
    %v471 = vpow.pop %v470
    %v472 = vmul.f32 %v441, 1.442695
    %v473 = vpow.pop %v472
    %v474 = vld [vmem:[%s6] sm:$0xff]
    %v475 = vld [vmem:[%s6 + $0x8] sm:$0xff]
    %v476 = vld [vmem:[%s6 + $0x10] sm:$0xff]
    %v477 = vld [vmem:[%s6 + $0x18] sm:$0xff]
    %v478 = vld [vmem:[%s6 + $0x20] sm:$0xff]
    %v479 = vld [vmem:[%s6 + $0x28] sm:$0xff]
    %v480 = vld [vmem:[%s6 + $0x30] sm:$0xff]
    %v481 = vld [vmem:[%s6 + $0x38] sm:$0xff]
    %v482 = vld [vmem:[%s6 + $0x40] sm:$0xff]
    %v483 = vld [vmem:[%s6 + $0x48] sm:$0xff]
    %v484 = vld [vmem:[%s6 + $0x50] sm:$0xff]
    %v485 = vld [vmem:[%s6 + $0x58] sm:$0xff]
    %v486 = vld [vmem:[%s6 + $0x60] sm:$0xff]
    %v487 = vld [vmem:[%s6 + $0x68] sm:$0xff]
    %v488 = vld [vmem:[%s6 + $0x70] sm:$0xff]
    %v489 = vld [vmem:[%s6 + $0x78] sm:$0xff]
    %506 = vrot.lane.b32.xlu0 %v474, 4
    %v507 = vpop.permute.xlu0 %506
    %508 = vrot.lane.b32.xlu0 %v475, 4
    %v509 = vpop.permute.xlu0 %508
    %510 = vrot.lane.b32.xlu0 %v476, 4
    %v511 = vpop.permute.xlu0 %510
    %512 = vrot.lane.b32.xlu0 %v477, 4
    %v513 = vpop.permute.xlu0 %512
    %514 = vrot.lane.b32.xlu0 %v478, 4
    %v515 = vpop.permute.xlu0 %514
    %516 = vrot.lane.b32.xlu0 %v479, 4
    %v517 = vpop.permute.xlu0 %516
    %518 = vrot.lane.b32.xlu0 %v480, 4
    %v519 = vpop.permute.xlu0 %518
    %520 = vrot.lane.b32.xlu0 %v481, 4
    %v521 = vpop.permute.xlu0 %520
    %522 = vrot.lane.b32.xlu0 %v482, 4
    %v523 = vpop.permute.xlu0 %522
    %524 = vrot.lane.b32.xlu0 %v483, 4
    %v525 = vpop.permute.xlu0 %524
    %526 = vrot.lane.b32.xlu0 %v484, 4
    %v527 = vpop.permute.xlu0 %526
    %528 = vrot.lane.b32.xlu0 %v485, 4
    %v529 = vpop.permute.xlu0 %528
    %530 = vrot.lane.b32.xlu0 %v486, 4
    %v531 = vpop.permute.xlu0 %530
    %532 = vrot.lane.b32.xlu0 %v487, 4
    %v533 = vpop.permute.xlu0 %532
    %534 = vrot.lane.b32.xlu0 %v488, 4
    %v535 = vpop.permute.xlu0 %534
    %536 = vrot.lane.b32.xlu0 %v489, 4
    %v537 = vpop.permute.xlu0 %536
    %v554 = vmul.f32 %v443, %v507
    %v555 = vmul.f32 %v445, %v509
    %v556 = vmul.f32 %v447, %v511
    %v557 = vmul.f32 %v449, %v513
    %v558 = vmul.f32 %v451, %v515
    %v559 = vmul.f32 %v453, %v517
    %v560 = vmul.f32 %v455, %v519
    %v561 = vmul.f32 %v457, %v521
    %v562 = vmul.f32 %v459, %v523
    %v563 = vmul.f32 %v461, %v525
    %v564 = vmul.f32 %v463, %v527
    %v565 = vmul.f32 %v465, %v529
    %v566 = vmul.f32 %v467, %v531
    %v567 = vmul.f32 %v469, %v533
    %v568 = vmul.f32 %v471, %v535
    %v569 = vmul.f32 %v473, %v537
    %586 = vrot.lane.b32.xlu0 %v554, 124
    %v587 = vpop.permute.xlu0 %586
    %588 = vrot.lane.b32.xlu0 %v555, 124
    %v589 = vpop.permute.xlu0 %588
    %590 = vrot.lane.b32.xlu0 %v556, 124
    %v591 = vpop.permute.xlu0 %590
    %592 = vrot.lane.b32.xlu0 %v557, 124
    %v593 = vpop.permute.xlu0 %592
    %594 = vrot.lane.b32.xlu0 %v558, 124
    %v595 = vpop.permute.xlu0 %594
    %596 = vrot.lane.b32.xlu0 %v559, 124
    %v597 = vpop.permute.xlu0 %596
    %598 = vrot.lane.b32.xlu0 %v560, 124
    %v599 = vpop.permute.xlu0 %598
    %600 = vrot.lane.b32.xlu0 %v561, 124
    %v601 = vpop.permute.xlu0 %600
    %602 = vrot.lane.b32.xlu0 %v562, 124
    %v603 = vpop.permute.xlu0 %602
    %604 = vrot.lane.b32.xlu0 %v563, 124
    %v605 = vpop.permute.xlu0 %604
    %606 = vrot.lane.b32.xlu0 %v564, 124
    %v607 = vpop.permute.xlu0 %606
    %608 = vrot.lane.b32.xlu0 %v565, 124
    %v609 = vpop.permute.xlu0 %608
    %610 = vrot.lane.b32.xlu0 %v566, 124
    %v611 = vpop.permute.xlu0 %610
    %612 = vrot.lane.b32.xlu0 %v567, 124
    %v613 = vpop.permute.xlu0 %612
    %614 = vrot.lane.b32.xlu0 %v568, 124
    %v615 = vpop.permute.xlu0 %614
    %616 = vrot.lane.b32.xlu0 %v569, 124
    %v617 = vpop.permute.xlu0 %616
    %v634 = vadd.f32 %v226, %v587
    %v635 = vadd.f32 %v228, %v589
    %v636 = vadd.f32 %v231, %v591
    %v637 = vadd.f32 %v233, %v593
    %v638 = vadd.f32 %v236, %v595
    %v639 = vadd.f32 %v238, %v597
    %v640 = vadd.f32 %v241, %v599
    %v641 = vadd.f32 %v243, %v601
    %v642 = vadd.f32 %v246, %v603
    %v643 = vadd.f32 %v248, %v605
    %v644 = vadd.f32 %v251, %v607
    %v645 = vadd.f32 %v253, %v609
    %v646 = vadd.f32 %v256, %v611
    %v647 = vadd.f32 %v258, %v613
    %v648 = vadd.f32 %v261, %v615
    %v649 = vadd.f32 %v263, %v617
    %v650 = vmul.f32 %v634, 0.18215
    %v651 = vmul.f32 %v635, 0.18215
    %v652 = vmul.f32 %v636, 0.18215
    %v653 = vmul.f32 %v637, 0.18215
    %v654 = vmul.f32 %v638, 0.18215
    %v655 = vmul.f32 %v639, 0.18215
    %v656 = vmul.f32 %v640, 0.18215
    %v657 = vmul.f32 %v641, 0.18215
    %v658 = vmul.f32 %v642, 0.18215
    %v659 = vmul.f32 %v643, 0.18215
    %v660 = vmul.f32 %v644, 0.18215
    %v661 = vmul.f32 %v645, 0.18215
    %v662 = vmul.f32 %v646, 0.18215
    %v663 = vmul.f32 %v647, 0.18215
    %v664 = vmul.f32 %v648, 0.18215
    %v665 = vmul.f32 %v649, 0.18215
    %v666 = vld [vmem:[%s7] sm:$0xff]
    %v667 = vld [vmem:[%s7 + $0x8] sm:$0xff]
    %v668 = vld [vmem:[%s7 + $0x10] sm:$0xff]
    %v669 = vld [vmem:[%s7 + $0x18] sm:$0xff]
    %v670 = vld [vmem:[%s7 + $0x20] sm:$0xff]
    %v671 = vld [vmem:[%s7 + $0x28] sm:$0xff]
    %v672 = vld [vmem:[%s7 + $0x30] sm:$0xff]
    %v673 = vld [vmem:[%s7 + $0x38] sm:$0xff]
    %v674 = vld [vmem:[%s7 + $0x40] sm:$0xff]
    %v675 = vld [vmem:[%s7 + $0x48] sm:$0xff]
    %v676 = vld [vmem:[%s7 + $0x50] sm:$0xff]
    %v677 = vld [vmem:[%s7 + $0x58] sm:$0xff]
    %v678 = vld [vmem:[%s7 + $0x60] sm:$0xff]
    %v679 = vld [vmem:[%s7 + $0x68] sm:$0xff]
    %v680 = vld [vmem:[%s7 + $0x70] sm:$0xff]
    %v681 = vld [vmem:[%s7 + $0x78] sm:$0xff]
    %v682 = vld [vmem:[%s5] sm:$0xff]
    %v683 = vld [vmem:[%s5 + $0x8] sm:$0xff]
    %v684 = vld [vmem:[%s5 + $0x10] sm:$0xff]
    %v685 = vld [vmem:[%s5 + $0x18] sm:$0xff]
    %v686 = vld [vmem:[%s5 + $0x20] sm:$0xff]
    %v687 = vld [vmem:[%s5 + $0x28] sm:$0xff]
    %v688 = vld [vmem:[%s5 + $0x30] sm:$0xff]
    %v689 = vld [vmem:[%s5 + $0x38] sm:$0xff]
    %v690 = vld [vmem:[%s5 + $0x40] sm:$0xff]
    %v691 = vld [vmem:[%s5 + $0x48] sm:$0xff]
    %v692 = vld [vmem:[%s5 + $0x50] sm:$0xff]
    %v693 = vld [vmem:[%s5 + $0x58] sm:$0xff]
    %v694 = vld [vmem:[%s5 + $0x60] sm:$0xff]
    %v695 = vld [vmem:[%s5 + $0x68] sm:$0xff]
    %v696 = vld [vmem:[%s5 + $0x70] sm:$0xff]
    %v697 = vld [vmem:[%s5 + $0x78] sm:$0xff]
    %699 = vset.pattern.permute.xlu0 0
    %700 = vperm.xlu0 %699, %v666
    %v701 = vpop.permute.xlu0 %700
    %704 = vset.pattern.permute.xlu0 0
    %705 = vperm.xlu0 %704, %v667
    %v706 = vpop.permute.xlu0 %705
    %709 = vset.pattern.permute.xlu0 0
    %710 = vperm.xlu0 %709, %v668
    %v711 = vpop.permute.xlu0 %710
    %714 = vset.pattern.permute.xlu0 0
    %715 = vperm.xlu0 %714, %v669
    %v716 = vpop.permute.xlu0 %715
    %719 = vset.pattern.permute.xlu0 0
    %720 = vperm.xlu0 %719, %v670
    %v721 = vpop.permute.xlu0 %720
    %724 = vset.pattern.permute.xlu0 0
    %725 = vperm.xlu0 %724, %v671
    %v726 = vpop.permute.xlu0 %725
    %729 = vset.pattern.permute.xlu0 0
    %730 = vperm.xlu0 %729, %v672
    %v731 = vpop.permute.xlu0 %730
    %734 = vset.pattern.permute.xlu0 0
    %735 = vperm.xlu0 %734, %v673
    %v736 = vpop.permute.xlu0 %735
    %739 = vset.pattern.permute.xlu0 0
    %740 = vperm.xlu0 %739, %v674
    %v741 = vpop.permute.xlu0 %740
    %744 = vset.pattern.permute.xlu0 0
    %745 = vperm.xlu0 %744, %v675
    %v746 = vpop.permute.xlu0 %745
    %749 = vset.pattern.permute.xlu0 0
    %750 = vperm.xlu0 %749, %v676
    %v751 = vpop.permute.xlu0 %750
    %754 = vset.pattern.permute.xlu0 0
    %755 = vperm.xlu0 %754, %v677
    %v756 = vpop.permute.xlu0 %755
    %759 = vset.pattern.permute.xlu0 0
    %760 = vperm.xlu0 %759, %v678
    %v761 = vpop.permute.xlu0 %760
    %764 = vset.pattern.permute.xlu0 0
    %765 = vperm.xlu0 %764, %v679
    %v766 = vpop.permute.xlu0 %765
    %769 = vset.pattern.permute.xlu0 0
    %770 = vperm.xlu0 %769, %v680
    %v771 = vpop.permute.xlu0 %770
    %774 = vset.pattern.permute.xlu0 0
    %775 = vperm.xlu0 %774, %v681
    %v776 = vpop.permute.xlu0 %775
    %v778 = vmul.f32 %v701, %v650
    %v779 = vmul.f32 %v706, %v651
    %v780 = vmul.f32 %v711, %v652
    %v781 = vmul.f32 %v716, %v653
    %v782 = vmul.f32 %v721, %v654
    %v783 = vmul.f32 %v726, %v655
    %v784 = vmul.f32 %v731, %v656
    %v785 = vmul.f32 %v736, %v657
    %v786 = vmul.f32 %v741, %v658
    %v787 = vmul.f32 %v746, %v659
    %v788 = vmul.f32 %v751, %v660
    %v789 = vmul.f32 %v756, %v661
    %v790 = vmul.f32 %v761, %v662
    %v791 = vmul.f32 %v766, %v663
    %v792 = vmul.f32 %v771, %v664
    %v793 = vmul.f32 %v776, %v665
    %794 = vset.pattern.permute.xlu0 1
    %795 = vperm.xlu0 %794, %v666
    %v796 = vpop.permute.xlu0 %795
    %798 = vset.pattern.permute.xlu0 1
    %799 = vperm.xlu0 %798, %v667
    %v800 = vpop.permute.xlu0 %799
    %802 = vset.pattern.permute.xlu0 1
    %803 = vperm.xlu0 %802, %v668
    %v804 = vpop.permute.xlu0 %803
    %806 = vset.pattern.permute.xlu0 1
    %807 = vperm.xlu0 %806, %v669
    %v808 = vpop.permute.xlu0 %807
    %810 = vset.pattern.permute.xlu0 1
    %811 = vperm.xlu0 %810, %v670
    %v812 = vpop.permute.xlu0 %811
    %814 = vset.pattern.permute.xlu0 1
    %815 = vperm.xlu0 %814, %v671
    %v816 = vpop.permute.xlu0 %815
    %818 = vset.pattern.permute.xlu0 1
    %819 = vperm.xlu0 %818, %v672
    %v820 = vpop.permute.xlu0 %819
    %822 = vset.pattern.permute.xlu0 1
    %823 = vperm.xlu0 %822, %v673
    %v824 = vpop.permute.xlu0 %823
    %826 = vset.pattern.permute.xlu0 1
    %827 = vperm.xlu0 %826, %v674
    %v828 = vpop.permute.xlu0 %827
    %830 = vset.pattern.permute.xlu0 1
    %831 = vperm.xlu0 %830, %v675
    %v832 = vpop.permute.xlu0 %831
    %834 = vset.pattern.permute.xlu0 1
    %835 = vperm.xlu0 %834, %v676
    %v836 = vpop.permute.xlu0 %835
    %838 = vset.pattern.permute.xlu0 1
    %839 = vperm.xlu0 %838, %v677
    %v840 = vpop.permute.xlu0 %839
    %842 = vset.pattern.permute.xlu0 1
    %843 = vperm.xlu0 %842, %v678
    %v844 = vpop.permute.xlu0 %843
    %846 = vset.pattern.permute.xlu0 1
    %847 = vperm.xlu0 %846, %v679
    %v848 = vpop.permute.xlu0 %847
    %850 = vset.pattern.permute.xlu0 1
    %851 = vperm.xlu0 %850, %v680
    %v852 = vpop.permute.xlu0 %851
    %854 = vset.pattern.permute.xlu0 1
    %855 = vperm.xlu0 %854, %v681
    %v856 = vpop.permute.xlu0 %855
    %v858 = vmul.f32 %v796, %v682
    %v859 = vmul.f32 %v800, %v683
    %v860 = vmul.f32 %v804, %v684
    %v861 = vmul.f32 %v808, %v685
    %v862 = vmul.f32 %v812, %v686
    %v863 = vmul.f32 %v816, %v687
    %v864 = vmul.f32 %v820, %v688
    %v865 = vmul.f32 %v824, %v689
    %v866 = vmul.f32 %v828, %v690
    %v867 = vmul.f32 %v832, %v691
    %v868 = vmul.f32 %v836, %v692
    %v869 = vmul.f32 %v840, %v693
    %v870 = vmul.f32 %v844, %v694
    %v871 = vmul.f32 %v848, %v695
    %v872 = vmul.f32 %v852, %v696
    %v873 = vmul.f32 %v856, %v697
    %v874 = vadd.f32 %v778, %v858
    %v875 = vadd.f32 %v779, %v859
    %v876 = vadd.f32 %v780, %v860
    %v877 = vadd.f32 %v781, %v861
    %v878 = vadd.f32 %v782, %v862
    %v879 = vadd.f32 %v783, %v863
    %v880 = vadd.f32 %v784, %v864
    %v881 = vadd.f32 %v785, %v865
    %v882 = vadd.f32 %v786, %v866
    %v883 = vadd.f32 %v787, %v867
    %v884 = vadd.f32 %v788, %v868
    %v885 = vadd.f32 %v789, %v869
    %v886 = vadd.f32 %v790, %v870
    %v887 = vadd.f32 %v791, %v871
    %v888 = vadd.f32 %v792, %v872
    %v889 = vadd.f32 %v793, %v873
    %890 = vset.pattern.permute.xlu0 2
    %891 = vperm.xlu0 %890, %v666
    %v892 = vpop.permute.xlu0 %891
    %894 = vset.pattern.permute.xlu0 2
    %895 = vperm.xlu0 %894, %v667
    %v896 = vpop.permute.xlu0 %895
    %898 = vset.pattern.permute.xlu0 2
    %899 = vperm.xlu0 %898, %v668
    %v900 = vpop.permute.xlu0 %899
    %902 = vset.pattern.permute.xlu0 2
    %903 = vperm.xlu0 %902, %v669
    %v904 = vpop.permute.xlu0 %903
    %906 = vset.pattern.permute.xlu0 2
    %907 = vperm.xlu0 %906, %v670
    %v908 = vpop.permute.xlu0 %907
    %910 = vset.pattern.permute.xlu0 2
    %911 = vperm.xlu0 %910, %v671
    %v912 = vpop.permute.xlu0 %911
    %914 = vset.pattern.permute.xlu0 2
    %915 = vperm.xlu0 %914, %v672
    %v916 = vpop.permute.xlu0 %915
    %918 = vset.pattern.permute.xlu0 2
    %919 = vperm.xlu0 %918, %v673
    %v920 = vpop.permute.xlu0 %919
    %922 = vset.pattern.permute.xlu0 2
    %923 = vperm.xlu0 %922, %v674
    %v924 = vpop.permute.xlu0 %923
    %926 = vset.pattern.permute.xlu0 2
    %927 = vperm.xlu0 %926, %v675
    %v928 = vpop.permute.xlu0 %927
    %930 = vset.pattern.permute.xlu0 2
    %931 = vperm.xlu0 %930, %v676
    %v932 = vpop.permute.xlu0 %931
    %934 = vset.pattern.permute.xlu0 2
    %935 = vperm.xlu0 %934, %v677
    %v936 = vpop.permute.xlu0 %935
    %938 = vset.pattern.permute.xlu0 2
    %939 = vperm.xlu0 %938, %v678
    %v940 = vpop.permute.xlu0 %939
    %942 = vset.pattern.permute.xlu0 2
    %943 = vperm.xlu0 %942, %v679
    %v944 = vpop.permute.xlu0 %943
    %946 = vset.pattern.permute.xlu0 2
    %947 = vperm.xlu0 %946, %v680
    %v948 = vpop.permute.xlu0 %947
    %950 = vset.pattern.permute.xlu0 2
    %951 = vperm.xlu0 %950, %v681
    %v952 = vpop.permute.xlu0 %951
    %v954 = vmul.f32 %v892, %v355
    %v955 = vmul.f32 %v896, %v357
    %v956 = vmul.f32 %v900, %v360
    %v957 = vmul.f32 %v904, %v362
    %v958 = vmul.f32 %v908, %v365
    %v959 = vmul.f32 %v912, %v367
    %v960 = vmul.f32 %v916, %v370
    %v961 = vmul.f32 %v920, %v372
    %v962 = vmul.f32 %v924, %v375
    %v963 = vmul.f32 %v928, %v377
    %v964 = vmul.f32 %v932, %v380
    %v965 = vmul.f32 %v936, %v382
    %v966 = vmul.f32 %v940, %v385
    %v967 = vmul.f32 %v944, %v387
    %v968 = vmul.f32 %v948, %v390
    %v969 = vmul.f32 %v952, %v392
    %v970 = vld [vmem:[%s10] sm:$0xff]
    %v972 = vrot.slane %v970, 4
    %vm973 = vcmask 31744
    %v975 = vsel %vm973, %v954, 0
    %v978 = vsel %vm973, %v955, 0
    %v981 = vsel %vm973, %v956, 0
    %v984 = vsel %vm973, %v957, 0
    %v987 = vsel %vm973, %v958, 0
    %v990 = vsel %vm973, %v959, 0
    %v993 = vsel %vm973, %v960, 0
    %v996 = vsel %vm973, %v961, 0
    %v999 = vsel %vm973, %v962, 0
    %v1002 = vsel %vm973, %v963, 0
    %v1005 = vsel %vm973, %v964, 0
    %v1008 = vsel %vm973, %v965, 0
    %v1011 = vsel %vm973, %v966, 0
    %v1014 = vsel %vm973, %v967, 0
    %v1017 = vsel %vm973, %v968, 0
    %v1020 = vsel %vm973, %v969, 0
    %vm1022 = vcmask 1043456
    %v1023 = vsel %vm1022, %v972, 0
    %1025 = vmatpush.msra.mxu0 0.0
    %1026 = vmatpush.msra.mxu0 0.0
    %1027 = vmatpush.msra.mxu0 0.0
    %1028 = vmatpush.msra.mxu0 0.0
    %1029 = vmatpush.msra.mxu0 0.0
    %1030 = vmatpush.msra.mxu0 0.0
    %1031 = vmatpush.msra.mxu0 0.0
    %1032 = vmatpush.msra.mxu0 0.0
    %1033 = vmatpush.msra.mxu0 0.0
    %1034 = vmatpush.msra.mxu0 0.0
    %1035 = vmatpush.msra.mxu0 0.0
    %1036 = vmatpush.msra.mxu0 0.0
    %1037 = vmatpush.msra.mxu0 0.0
    %1038 = vmatpush.msra.mxu0 0.0
    %1039 = vmatpush.msra.mxu0 0.0
    %1040 = vmatpush.msra.mxu0 %v1023
    %1041 = vmatmul.f32.gmra.mxu0 %v975
    %v1042 = vpop.f32.mrf.mxu0
    %v1043 = vadd.f32 0.0, %v1042
    %1044 = vmatmul.f32.gmra.mxu0 %v978
    %v1045 = vpop.f32.mrf.mxu0
    %v1046 = vadd.f32 0.0, %v1045
    %1047 = vmatmul.f32.gmra.mxu0 %v981
    %v1048 = vpop.f32.mrf.mxu0
    %v1049 = vadd.f32 0.0, %v1048
    %1050 = vmatmul.f32.gmra.mxu0 %v984
    %v1051 = vpop.f32.mrf.mxu0
    %v1052 = vadd.f32 0.0, %v1051
    %1053 = vmatmul.f32.gmra.mxu0 %v987
    %v1054 = vpop.f32.mrf.mxu0
    %v1055 = vadd.f32 0.0, %v1054
    %1056 = vmatmul.f32.gmra.mxu0 %v990
    %v1057 = vpop.f32.mrf.mxu0
    %v1058 = vadd.f32 0.0, %v1057
    %1059 = vmatmul.f32.gmra.mxu0 %v993
    %v1060 = vpop.f32.mrf.mxu0
    %v1061 = vadd.f32 0.0, %v1060
    %1062 = vmatmul.f32.gmra.mxu0 %v996
    %v1063 = vpop.f32.mrf.mxu0
    %v1064 = vadd.f32 0.0, %v1063
    %1065 = vmatmul.f32.gmra.mxu0 %v999
    %v1066 = vpop.f32.mrf.mxu0
    %v1067 = vadd.f32 0.0, %v1066
    %1068 = vmatmul.f32.gmra.mxu0 %v1002
    %v1069 = vpop.f32.mrf.mxu0
    %v1070 = vadd.f32 0.0, %v1069
    %1071 = vmatmul.f32.gmra.mxu0 %v1005
    %v1072 = vpop.f32.mrf.mxu0
    %v1073 = vadd.f32 0.0, %v1072
    %1074 = vmatmul.f32.gmra.mxu0 %v1008
    %v1075 = vpop.f32.mrf.mxu0
    %v1076 = vadd.f32 0.0, %v1075
    %1077 = vmatmul.f32.gmra.mxu0 %v1011
    %v1078 = vpop.f32.mrf.mxu0
    %v1079 = vadd.f32 0.0, %v1078
    %1080 = vmatmul.f32.gmra.mxu0 %v1014
    %v1081 = vpop.f32.mrf.mxu0
    %v1082 = vadd.f32 0.0, %v1081
    %1083 = vmatmul.f32.gmra.mxu0 %v1017
    %v1084 = vpop.f32.mrf.mxu0
    %v1085 = vadd.f32 0.0, %v1084
    %1086 = vmatmul.f32.gmra.mxu0 %v1020
    %v1087 = vpop.f32.mrf.mxu0
    %v1088 = vadd.f32 0.0, %v1087
    %1089 = vdwg.mxu0
    %v1091 = vsel %vm973, %v874, 0
    %v1094 = vsel %vm973, %v875, 0
    %v1097 = vsel %vm973, %v876, 0
    %v1100 = vsel %vm973, %v877, 0
    %v1103 = vsel %vm973, %v878, 0
    %v1106 = vsel %vm973, %v879, 0
    %v1109 = vsel %vm973, %v880, 0
    %v1112 = vsel %vm973, %v881, 0
    %v1115 = vsel %vm973, %v882, 0
    %v1118 = vsel %vm973, %v883, 0
    %v1121 = vsel %vm973, %v884, 0
    %v1124 = vsel %vm973, %v885, 0
    %v1127 = vsel %vm973, %v886, 0
    %v1130 = vsel %vm973, %v887, 0
    %v1133 = vsel %vm973, %v888, 0
    %v1136 = vsel %vm973, %v889, 0
    %v1138 = vsel %vm1022, %v970, 0
    %1140 = vmatpush.msra.mxu0 0.0
    %1141 = vmatpush.msra.mxu0 0.0
    %1142 = vmatpush.msra.mxu0 0.0
    %1143 = vmatpush.msra.mxu0 0.0
    %1144 = vmatpush.msra.mxu0 0.0
    %1145 = vmatpush.msra.mxu0 0.0
    %1146 = vmatpush.msra.mxu0 0.0
    %1147 = vmatpush.msra.mxu0 0.0
    %1148 = vmatpush.msra.mxu0 0.0
    %1149 = vmatpush.msra.mxu0 0.0
    %1150 = vmatpush.msra.mxu0 0.0
    %1151 = vmatpush.msra.mxu0 0.0
    %1152 = vmatpush.msra.mxu0 0.0
    %1153 = vmatpush.msra.mxu0 0.0
    %1154 = vmatpush.msra.mxu0 0.0
    %1155 = vmatpush.msra.mxu0 %v1138
    %1156 = vmatmul.f32.gmra.mxu0 %v1091
    %v1157 = vpop.f32.mrf.mxu0
    %v1158 = vadd.f32 %v1043, %v1157
    %1159 = vmatmul.f32.gmra.mxu0 %v1094
    %v1160 = vpop.f32.mrf.mxu0
    %v1161 = vadd.f32 %v1046, %v1160
    %1162 = vmatmul.f32.gmra.mxu0 %v1097
    %v1163 = vpop.f32.mrf.mxu0
    %v1164 = vadd.f32 %v1049, %v1163
    %1165 = vmatmul.f32.gmra.mxu0 %v1100
    %v1166 = vpop.f32.mrf.mxu0
    %v1167 = vadd.f32 %v1052, %v1166
    %1168 = vmatmul.f32.gmra.mxu0 %v1103
    %v1169 = vpop.f32.mrf.mxu0
    %v1170 = vadd.f32 %v1055, %v1169
    %1171 = vmatmul.f32.gmra.mxu0 %v1106
    %v1172 = vpop.f32.mrf.mxu0
    %v1173 = vadd.f32 %v1058, %v1172
    %1174 = vmatmul.f32.gmra.mxu0 %v1109
    %v1175 = vpop.f32.mrf.mxu0
    %v1176 = vadd.f32 %v1061, %v1175
    %1177 = vmatmul.f32.gmra.mxu0 %v1112
    %v1178 = vpop.f32.mrf.mxu0
    %v1179 = vadd.f32 %v1064, %v1178
    %1180 = vmatmul.f32.gmra.mxu0 %v1115
    %v1181 = vpop.f32.mrf.mxu0
    %v1182 = vadd.f32 %v1067, %v1181
    %1183 = vmatmul.f32.gmra.mxu0 %v1118
    %v1184 = vpop.f32.mrf.mxu0
    %v1185 = vadd.f32 %v1070, %v1184
    %1186 = vmatmul.f32.gmra.mxu0 %v1121
    %v1187 = vpop.f32.mrf.mxu0
    %v1188 = vadd.f32 %v1073, %v1187
    %1189 = vmatmul.f32.gmra.mxu0 %v1124
    %v1190 = vpop.f32.mrf.mxu0
    %v1191 = vadd.f32 %v1076, %v1190
    %1192 = vmatmul.f32.gmra.mxu0 %v1127
    %v1193 = vpop.f32.mrf.mxu0
    %v1194 = vadd.f32 %v1079, %v1193
    %1195 = vmatmul.f32.gmra.mxu0 %v1130
    %v1196 = vpop.f32.mrf.mxu0
    %v1197 = vadd.f32 %v1082, %v1196
    %1198 = vmatmul.f32.gmra.mxu0 %v1133
    %v1199 = vpop.f32.mrf.mxu0
    %v1200 = vadd.f32 %v1085, %v1199
    %1201 = vmatmul.f32.gmra.mxu0 %v1136
    %v1202 = vpop.f32.mrf.mxu0
    %v1203 = vadd.f32 %v1088, %v1202
    %1204 = vdwg.mxu0
    %1205 = vrot.lane.b32.xlu0 %v60, 64
    %v1206 = vpop.permute.xlu0 %1205
    %v1208 = vadd.f32 %v1158, %v1206
    %v1209 = vadd.f32 %v1161, %v1206
    %v1210 = vadd.f32 %v1164, %v1206
    %v1211 = vadd.f32 %v1167, %v1206
    %v1212 = vadd.f32 %v1170, %v1206
    %v1213 = vadd.f32 %v1173, %v1206
    %v1214 = vadd.f32 %v1176, %v1206
    %v1215 = vadd.f32 %v1179, %v1206
    %v1216 = vadd.f32 %v1182, %v1206
    %v1217 = vadd.f32 %v1185, %v1206
    %v1218 = vadd.f32 %v1188, %v1206
    %v1219 = vadd.f32 %v1191, %v1206
    %v1220 = vadd.f32 %v1194, %v1206
    %v1221 = vadd.f32 %v1197, %v1206
    %v1222 = vadd.f32 %v1200, %v1206
    %v1223 = vadd.f32 %v1203, %v1206
    %v1224 = vld [vmem:[%s4] sm:$0xff]
    %v1225 = vld [vmem:[%s4 + $0x8] sm:$0xff]
    %v1226 = vld [vmem:[%s4 + $0x10] sm:$0xff]
    %v1227 = vld [vmem:[%s4 + $0x18] sm:$0xff]
    %v1228 = vld [vmem:[%s4 + $0x20] sm:$0xff]
    %v1229 = vld [vmem:[%s4 + $0x28] sm:$0xff]
    %v1230 = vld [vmem:[%s4 + $0x30] sm:$0xff]
    %v1231 = vld [vmem:[%s4 + $0x38] sm:$0xff]
    %v1232 = vld [vmem:[%s4 + $0x40] sm:$0xff]
    %v1233 = vld [vmem:[%s4 + $0x48] sm:$0xff]
    %v1234 = vld [vmem:[%s4 + $0x50] sm:$0xff]
    %v1235 = vld [vmem:[%s4 + $0x58] sm:$0xff]
    %v1236 = vld [vmem:[%s4 + $0x60] sm:$0xff]
    %v1237 = vld [vmem:[%s4 + $0x68] sm:$0xff]
    %v1238 = vld [vmem:[%s4 + $0x70] sm:$0xff]
    %v1239 = vld [vmem:[%s4 + $0x78] sm:$0xff]
    %1244 = vrot.lane.b32.xlu0 %v46, 96
    %v1245 = vpop.permute.xlu0 %1244
    %1246 = vrot.lane.b32.xlu0 %v48, 96
    %v1247 = vpop.permute.xlu0 %1246
    %1248 = vrot.lane.b32.xlu0 %v50, 96
    %v1249 = vpop.permute.xlu0 %1248
    %1250 = vrot.lane.b32.xlu0 %v52, 96
    %v1251 = vpop.permute.xlu0 %1250
    %v1257 = vsel %vm62, %v1224, 0
    %v1260 = vsel %vm62, %v1225, 0
    %v1263 = vsel %vm62, %v1226, 0
    %v1266 = vsel %vm62, %v1227, 0
    %v1269 = vsel %vm62, %v1228, 0
    %v1272 = vsel %vm62, %v1229, 0
    %v1275 = vsel %vm62, %v1230, 0
    %v1278 = vsel %vm62, %v1231, 0
    %v1281 = vsel %vm62, %v1232, 0
    %v1284 = vsel %vm62, %v1233, 0
    %v1287 = vsel %vm62, %v1234, 0
    %v1290 = vsel %vm62, %v1235, 0
    %v1293 = vsel %vm62, %v1236, 0
    %v1296 = vsel %vm62, %v1237, 0
    %v1299 = vsel %vm62, %v1238, 0
    %v1302 = vsel %vm62, %v1239, 0
    %1304 = vmatpush.msra.mxu0 0.0
    %1305 = vmatpush.msra.mxu0 0.0
    %1306 = vmatpush.msra.mxu0 0.0
    %1307 = vmatpush.msra.mxu0 0.0
    %1308 = vmatpush.msra.mxu0 0.0
    %1309 = vmatpush.msra.mxu0 0.0
    %1310 = vmatpush.msra.mxu0 0.0
    %1311 = vmatpush.msra.mxu0 0.0
    %1312 = vmatpush.msra.mxu0 0.0
    %1313 = vmatpush.msra.mxu0 0.0
    %1314 = vmatpush.msra.mxu0 0.0
    %1315 = vmatpush.msra.mxu0 0.0
    %1316 = vmatpush.msra.mxu0 %v1251
    %1317 = vmatpush.msra.mxu0 %v1249
    %1318 = vmatpush.msra.mxu0 %v1247
    %1319 = vmatpush.msra.mxu0 %v1245
    %1320 = vmatmul.f32.gmra.mxu0 %v1257
    %v1321 = vpop.f32.mrf.mxu0
    %v1322 = vadd.f32 0.0, %v1321
    %1323 = vmatmul.f32.gmra.mxu0 %v1260
    %v1324 = vpop.f32.mrf.mxu0
    %v1325 = vadd.f32 0.0, %v1324
    %1326 = vmatmul.f32.gmra.mxu0 %v1263
    %v1327 = vpop.f32.mrf.mxu0
    %v1328 = vadd.f32 0.0, %v1327
    %1329 = vmatmul.f32.gmra.mxu0 %v1266
    %v1330 = vpop.f32.mrf.mxu0
    %v1331 = vadd.f32 0.0, %v1330
    %1332 = vmatmul.f32.gmra.mxu0 %v1269
    %v1333 = vpop.f32.mrf.mxu0
    %v1334 = vadd.f32 0.0, %v1333
    %1335 = vmatmul.f32.gmra.mxu0 %v1272
    %v1336 = vpop.f32.mrf.mxu0
    %v1337 = vadd.f32 0.0, %v1336
    %1338 = vmatmul.f32.gmra.mxu0 %v1275
    %v1339 = vpop.f32.mrf.mxu0
    %v1340 = vadd.f32 0.0, %v1339
    %1341 = vmatmul.f32.gmra.mxu0 %v1278
    %v1342 = vpop.f32.mrf.mxu0
    %v1343 = vadd.f32 0.0, %v1342
    %1344 = vmatmul.f32.gmra.mxu0 %v1281
    %v1345 = vpop.f32.mrf.mxu0
    %v1346 = vadd.f32 0.0, %v1345
    %1347 = vmatmul.f32.gmra.mxu0 %v1284
    %v1348 = vpop.f32.mrf.mxu0
    %v1349 = vadd.f32 0.0, %v1348
    %1350 = vmatmul.f32.gmra.mxu0 %v1287
    %v1351 = vpop.f32.mrf.mxu0
    %v1352 = vadd.f32 0.0, %v1351
    %1353 = vmatmul.f32.gmra.mxu0 %v1290
    %v1354 = vpop.f32.mrf.mxu0
    %v1355 = vadd.f32 0.0, %v1354
    %1356 = vmatmul.f32.gmra.mxu0 %v1293
    %v1357 = vpop.f32.mrf.mxu0
    %v1358 = vadd.f32 0.0, %v1357
    %1359 = vmatmul.f32.gmra.mxu0 %v1296
    %v1360 = vpop.f32.mrf.mxu0
    %v1361 = vadd.f32 0.0, %v1360
    %1362 = vmatmul.f32.gmra.mxu0 %v1299
    %v1363 = vpop.f32.mrf.mxu0
    %v1364 = vadd.f32 0.0, %v1363
    %1365 = vmatmul.f32.gmra.mxu0 %v1302
    %v1366 = vpop.f32.mrf.mxu0
    %v1367 = vadd.f32 0.0, %v1366
    %1368 = vdwg.mxu0
    %v1369 = vadd.f32 %v1208, %v1322
    %v1370 = vadd.f32 %v1209, %v1325
    %v1371 = vadd.f32 %v1210, %v1328
    %v1372 = vadd.f32 %v1211, %v1331
    %v1373 = vadd.f32 %v1212, %v1334
    %v1374 = vadd.f32 %v1213, %v1337
    %v1375 = vadd.f32 %v1214, %v1340
    %v1376 = vadd.f32 %v1215, %v1343
    %v1377 = vadd.f32 %v1216, %v1346
    %v1378 = vadd.f32 %v1217, %v1349
    %v1379 = vadd.f32 %v1218, %v1352
    %v1380 = vadd.f32 %v1219, %v1355
    %v1381 = vadd.f32 %v1220, %v1358
    %v1382 = vadd.f32 %v1221, %v1361
    %v1383 = vadd.f32 %v1222, %v1364
    %v1384 = vadd.f32 %v1223, %v1367
    %1385 = vrot.lane.b32.xlu0 %v60, 96
    %v1386 = vpop.permute.xlu0 %1385
    %v1388 = vadd.f32 %v1369, %v1386
    %v1389 = vadd.f32 %v1370, %v1386
    %v1390 = vadd.f32 %v1371, %v1386
    %v1391 = vadd.f32 %v1372, %v1386
    %v1392 = vadd.f32 %v1373, %v1386
    %v1393 = vadd.f32 %v1374, %v1386
    %v1394 = vadd.f32 %v1375, %v1386
    %v1395 = vadd.f32 %v1376, %v1386
    %v1396 = vadd.f32 %v1377, %v1386
    %v1397 = vadd.f32 %v1378, %v1386
    %v1398 = vadd.f32 %v1379, %v1386
    %v1399 = vadd.f32 %v1380, %v1386
    %v1400 = vadd.f32 %v1381, %v1386
    %v1401 = vadd.f32 %v1382, %v1386
    %v1402 = vadd.f32 %v1383, %v1386
    %v1403 = vadd.f32 %v1384, %v1386
    %1404 = vrot.lane.b32.xlu0 %v46, 64
    %v1405 = vpop.permute.xlu0 %1404
    %1406 = vrot.lane.b32.xlu0 %v48, 64
    %v1407 = vpop.permute.xlu0 %1406
    %1408 = vrot.lane.b32.xlu0 %v50, 64
    %v1409 = vpop.permute.xlu0 %1408
    %1410 = vrot.lane.b32.xlu0 %v52, 64
    %v1411 = vpop.permute.xlu0 %1410
    %v1417 = vsel %vm62, %v1388, 0
    %v1420 = vsel %vm62, %v1389, 0
    %v1423 = vsel %vm62, %v1390, 0
    %v1426 = vsel %vm62, %v1391, 0
    %v1429 = vsel %vm62, %v1392, 0
    %v1432 = vsel %vm62, %v1393, 0
    %v1435 = vsel %vm62, %v1394, 0
    %v1438 = vsel %vm62, %v1395, 0
    %v1441 = vsel %vm62, %v1396, 0
    %v1444 = vsel %vm62, %v1397, 0
    %v1447 = vsel %vm62, %v1398, 0
    %v1450 = vsel %vm62, %v1399, 0
    %v1453 = vsel %vm62, %v1400, 0
    %v1456 = vsel %vm62, %v1401, 0
    %v1459 = vsel %vm62, %v1402, 0
    %v1462 = vsel %vm62, %v1403, 0
    %1464 = vmatpush.msra.mxu0 0.0
    %1465 = vmatpush.msra.mxu0 0.0
    %1466 = vmatpush.msra.mxu0 0.0
    %1467 = vmatpush.msra.mxu0 0.0
    %1468 = vmatpush.msra.mxu0 0.0
    %1469 = vmatpush.msra.mxu0 0.0
    %1470 = vmatpush.msra.mxu0 0.0
    %1471 = vmatpush.msra.mxu0 0.0
    %1472 = vmatpush.msra.mxu0 0.0
    %1473 = vmatpush.msra.mxu0 0.0
    %1474 = vmatpush.msra.mxu0 0.0
    %1475 = vmatpush.msra.mxu0 0.0
    %1476 = vmatpush.msra.mxu0 %v1411
    %1477 = vmatpush.msra.mxu0 %v1409
    %1478 = vmatpush.msra.mxu0 %v1407
    %1479 = vmatpush.msra.mxu0 %v1405
    %1480 = vmatmul.f32.gmra.mxu0 %v1417
    %v1481 = vpop.f32.mrf.mxu0
    %v1482 = vadd.f32 0.0, %v1481
    %1483 = vmatmul.f32.gmra.mxu0 %v1420
    %v1484 = vpop.f32.mrf.mxu0
    %v1485 = vadd.f32 0.0, %v1484
    %1486 = vmatmul.f32.gmra.mxu0 %v1423
    %v1487 = vpop.f32.mrf.mxu0
    %v1488 = vadd.f32 0.0, %v1487
    %1489 = vmatmul.f32.gmra.mxu0 %v1426
    %v1490 = vpop.f32.mrf.mxu0
    %v1491 = vadd.f32 0.0, %v1490
    %1492 = vmatmul.f32.gmra.mxu0 %v1429
    %v1493 = vpop.f32.mrf.mxu0
    %v1494 = vadd.f32 0.0, %v1493
    %1495 = vmatmul.f32.gmra.mxu0 %v1432
    %v1496 = vpop.f32.mrf.mxu0
    %v1497 = vadd.f32 0.0, %v1496
    %1498 = vmatmul.f32.gmra.mxu0 %v1435
    %v1499 = vpop.f32.mrf.mxu0
    %v1500 = vadd.f32 0.0, %v1499
    %1501 = vmatmul.f32.gmra.mxu0 %v1438
    %v1502 = vpop.f32.mrf.mxu0
    %v1503 = vadd.f32 0.0, %v1502
    %1504 = vmatmul.f32.gmra.mxu0 %v1441
    %v1505 = vpop.f32.mrf.mxu0
    %v1506 = vadd.f32 0.0, %v1505
    %1507 = vmatmul.f32.gmra.mxu0 %v1444
    %v1508 = vpop.f32.mrf.mxu0
    %v1509 = vadd.f32 0.0, %v1508
    %1510 = vmatmul.f32.gmra.mxu0 %v1447
    %v1511 = vpop.f32.mrf.mxu0
    %v1512 = vadd.f32 0.0, %v1511
    %1513 = vmatmul.f32.gmra.mxu0 %v1450
    %v1514 = vpop.f32.mrf.mxu0
    %v1515 = vadd.f32 0.0, %v1514
    %1516 = vmatmul.f32.gmra.mxu0 %v1453
    %v1517 = vpop.f32.mrf.mxu0
    %v1518 = vadd.f32 0.0, %v1517
    %1519 = vmatmul.f32.gmra.mxu0 %v1456
    %v1520 = vpop.f32.mrf.mxu0
    %v1521 = vadd.f32 0.0, %v1520
    %1522 = vmatmul.f32.gmra.mxu0 %v1459
    %v1523 = vpop.f32.mrf.mxu0
    %v1524 = vadd.f32 0.0, %v1523
    %1525 = vmatmul.f32.gmra.mxu0 %v1462
    %v1526 = vpop.f32.mrf.mxu0
    %v1527 = vadd.f32 0.0, %v1526
    %1528 = vdwg.mxu0
    %1529 = vrot.lane.b32.xlu0 %v46, 32
    %v1530 = vpop.permute.xlu0 %1529
    %1531 = vrot.lane.b32.xlu0 %v48, 32
    %v1532 = vpop.permute.xlu0 %1531
    %1533 = vrot.lane.b32.xlu0 %v50, 32
    %v1534 = vpop.permute.xlu0 %1533
    %1535 = vrot.lane.b32.xlu0 %v52, 32
    %v1536 = vpop.permute.xlu0 %1535
    %v1542 = vsel %vm62, %v118, 0
    %v1545 = vsel %vm62, %v119, 0
    %1547 = vmatpush.msra.mxu0 0.0
    %1548 = vmatpush.msra.mxu0 0.0
    %1549 = vmatpush.msra.mxu0 0.0
    %1550 = vmatpush.msra.mxu0 0.0
    %1551 = vmatpush.msra.mxu0 0.0
    %1552 = vmatpush.msra.mxu0 0.0
    %1553 = vmatpush.msra.mxu0 0.0
    %1554 = vmatpush.msra.mxu0 0.0
    %1555 = vmatpush.msra.mxu0 0.0
    %1556 = vmatpush.msra.mxu0 0.0
    %1557 = vmatpush.msra.mxu0 0.0
    %1558 = vmatpush.msra.mxu0 0.0
    %1559 = vmatpush.msra.mxu0 %v1536
    %1560 = vmatpush.msra.mxu0 %v1534
    %1561 = vmatpush.msra.mxu0 %v1532
    %1562 = vmatpush.msra.mxu0 %v1530
    %1563 = vmatmul.f32.gmra.mxu0 %v1542
    %v1564 = vpop.f32.mrf.mxu0
    %v1565 = vadd.f32 0.0, %v1564
    %1566 = vmatmul.f32.gmra.mxu0 %v1545
    %v1567 = vpop.f32.mrf.mxu0
    %v1568 = vadd.f32 0.0, %v1567
    %1569 = vdwg.mxu0
    %1570 = vmatpush.msra.mxu0 0.0
    %1571 = vmatpush.msra.mxu0 0.0
    %1572 = vmatpush.msra.mxu0 0.0
    %1573 = vmatpush.msra.mxu0 0.0
    %1574 = vmatpush.msra.mxu0 0.0
    %1575 = vmatpush.msra.mxu0 0.0
    %1576 = vmatpush.msra.mxu0 0.0
    %1577 = vmatpush.msra.mxu0 0.0
    %1578 = vmatpush.msra.mxu0 0.0
    %1579 = vmatpush.msra.mxu0 0.0
    %1580 = vmatpush.msra.mxu0 0.0
    %1581 = vmatpush.msra.mxu0 0.0
    %1582 = vmatpush.msra.mxu0 %v53
    %1583 = vmatpush.msra.mxu0 %v51
    %1584 = vmatpush.msra.mxu0 %v49
    %1585 = vmatpush.msra.mxu0 %v47
    %1586 = vmatmul.f32.gmra.mxu0 %v1542
    %v1587 = vpop.f32.mrf.mxu0
    %v1588 = vadd.f32 0.0, %v1587
    %1589 = vmatmul.f32.gmra.mxu0 %v1545
    %v1590 = vpop.f32.mrf.mxu0
    %v1591 = vadd.f32 0.0, %v1590
    %1592 = vdwg.mxu0
    %v1594 = vsel %vm62, %v1482, 0
    %v1597 = vsel %vm62, %v1485, 0
    %v1600 = vsel %vm62, %v1488, 0
    %v1603 = vsel %vm62, %v1491, 0
    %v1606 = vsel %vm62, %v1494, 0
    %v1609 = vsel %vm62, %v1497, 0
    %v1612 = vsel %vm62, %v1500, 0
    %v1615 = vsel %vm62, %v1503, 0
    %v1618 = vsel %vm62, %v1565, 0
    %1620 = vmatpush.xpose.msra.mxu0 0.0
    %1621 = vmatpush.xpose.msra.mxu0 0.0
    %1622 = vmatpush.xpose.msra.mxu0 0.0
    %1623 = vmatpush.xpose.msra.mxu0 0.0
    %1624 = vmatpush.xpose.msra.mxu0 0.0
    %1625 = vmatpush.xpose.msra.mxu0 0.0
    %1626 = vmatpush.xpose.msra.mxu0 0.0
    %1627 = vmatpush.xpose.msra.mxu0 0.0
    %1628 = vmatpush.xpose.msra.mxu0 0.0
    %1629 = vmatpush.xpose.msra.mxu0 0.0
    %1630 = vmatpush.xpose.msra.mxu0 0.0
    %1631 = vmatpush.xpose.msra.mxu0 0.0
    %1632 = vmatpush.xpose.msra.mxu0 0.0
    %1633 = vmatpush.xpose.msra.mxu0 0.0
    %1634 = vmatpush.xpose.msra.mxu0 0.0
    %1635 = vmatpush.xpose.msra.mxu0 %v1618
    %1636 = vmatmul.f32.gmra.mxu0 %v1594
    %v1637 = vpop.f32.mrf.mxu0
    %v1638 = vadd.f32 0.0, %v1637
    %1639 = vmatmul.f32.gmra.mxu0 %v1597
    %v1640 = vpop.f32.mrf.mxu0
    %v1641 = vadd.f32 0.0, %v1640
    %1642 = vmatmul.f32.gmra.mxu0 %v1600
    %v1643 = vpop.f32.mrf.mxu0
    %v1644 = vadd.f32 0.0, %v1643
    %1645 = vmatmul.f32.gmra.mxu0 %v1603
    %v1646 = vpop.f32.mrf.mxu0
    %v1647 = vadd.f32 0.0, %v1646
    %1648 = vmatmul.f32.gmra.mxu0 %v1606
    %v1649 = vpop.f32.mrf.mxu0
    %v1650 = vadd.f32 0.0, %v1649
    %1651 = vmatmul.f32.gmra.mxu0 %v1609
    %v1652 = vpop.f32.mrf.mxu0
    %v1653 = vadd.f32 0.0, %v1652
    %1654 = vmatmul.f32.gmra.mxu0 %v1612
    %v1655 = vpop.f32.mrf.mxu0
    %v1656 = vadd.f32 0.0, %v1655
    %1657 = vmatmul.f32.gmra.mxu0 %v1615
    %v1658 = vpop.f32.mrf.mxu0
    %v1659 = vadd.f32 0.0, %v1658
    %1660 = vdwg.mxu0
    %v1662 = vsel %vm62, %v1506, 0
    %v1665 = vsel %vm62, %v1509, 0
    %v1668 = vsel %vm62, %v1512, 0
    %v1671 = vsel %vm62, %v1515, 0
    %v1674 = vsel %vm62, %v1518, 0
    %v1677 = vsel %vm62, %v1521, 0
    %v1680 = vsel %vm62, %v1524, 0
    %v1683 = vsel %vm62, %v1527, 0
    %v1686 = vsel %vm62, %v1568, 0
    %1688 = vmatpush.xpose.msra.mxu0 0.0
    %1689 = vmatpush.xpose.msra.mxu0 0.0
    %1690 = vmatpush.xpose.msra.mxu0 0.0
    %1691 = vmatpush.xpose.msra.mxu0 0.0
    %1692 = vmatpush.xpose.msra.mxu0 0.0
    %1693 = vmatpush.xpose.msra.mxu0 0.0
    %1694 = vmatpush.xpose.msra.mxu0 0.0
    %1695 = vmatpush.xpose.msra.mxu0 0.0
    %1696 = vmatpush.xpose.msra.mxu0 0.0
    %1697 = vmatpush.xpose.msra.mxu0 0.0
    %1698 = vmatpush.xpose.msra.mxu0 0.0
    %1699 = vmatpush.xpose.msra.mxu0 0.0
    %1700 = vmatpush.xpose.msra.mxu0 0.0
    %1701 = vmatpush.xpose.msra.mxu0 0.0
    %1702 = vmatpush.xpose.msra.mxu0 0.0
    %1703 = vmatpush.xpose.msra.mxu0 %v1686
    %1704 = vmatmul.f32.gmra.mxu0 %v1662
    %v1705 = vpop.f32.mrf.mxu0
    %v1706 = vadd.f32 0.0, %v1705
    %1707 = vmatmul.f32.gmra.mxu0 %v1665
    %v1708 = vpop.f32.mrf.mxu0
    %v1709 = vadd.f32 0.0, %v1708
    %1710 = vmatmul.f32.gmra.mxu0 %v1668
    %v1711 = vpop.f32.mrf.mxu0
    %v1712 = vadd.f32 0.0, %v1711
    %1713 = vmatmul.f32.gmra.mxu0 %v1671
    %v1714 = vpop.f32.mrf.mxu0
    %v1715 = vadd.f32 0.0, %v1714
    %1716 = vmatmul.f32.gmra.mxu0 %v1674
    %v1717 = vpop.f32.mrf.mxu0
    %v1718 = vadd.f32 0.0, %v1717
    %1719 = vmatmul.f32.gmra.mxu0 %v1677
    %v1720 = vpop.f32.mrf.mxu0
    %v1721 = vadd.f32 0.0, %v1720
    %1722 = vmatmul.f32.gmra.mxu0 %v1680
    %v1723 = vpop.f32.mrf.mxu0
    %v1724 = vadd.f32 0.0, %v1723
    %1725 = vmatmul.f32.gmra.mxu0 %v1683
    %v1726 = vpop.f32.mrf.mxu0
    %v1727 = vadd.f32 0.0, %v1726
    %1728 = vdwg.mxu0
    %v1729 = vmul.f32 %v1638, 0.17677669
    %v1730 = vmul.f32 %v1641, 0.17677669
    %v1731 = vmul.f32 %v1644, 0.17677669
    %v1732 = vmul.f32 %v1647, 0.17677669
    %v1733 = vmul.f32 %v1650, 0.17677669
    %v1734 = vmul.f32 %v1653, 0.17677669
    %v1735 = vmul.f32 %v1656, 0.17677669
    %v1736 = vmul.f32 %v1659, 0.17677669
    %v1737 = vmul.f32 %v1706, 0.17677669
    %v1738 = vmul.f32 %v1709, 0.17677669
    %v1739 = vmul.f32 %v1712, 0.17677669
    %v1740 = vmul.f32 %v1715, 0.17677669
    %v1741 = vmul.f32 %v1718, 0.17677669
    %v1742 = vmul.f32 %v1721, 0.17677669
    %v1743 = vmul.f32 %v1724, 0.17677669
    %v1744 = vmul.f32 %v1727, 0.17677669
    %vm1745 = vcmask 64512
    %v1746 = vsel %vm1745, %v1729, -inf
    %1747 = vmax.xlane.f32.xlu0 %v1746
    %v1748 = vpop.xlane.xlu0 %1747
    %v1749 = vsel %vm1745, %v1730, -inf
    %1750 = vmax.xlane.f32.xlu0 %v1749
    %v1751 = vpop.xlane.xlu0 %1750
    %v1752 = vsel %vm1745, %v1731, -inf
    %1753 = vmax.xlane.f32.xlu0 %v1752
    %v1754 = vpop.xlane.xlu0 %1753
    %v1755 = vsel %vm1745, %v1732, -inf
    %1756 = vmax.xlane.f32.xlu0 %v1755
    %v1757 = vpop.xlane.xlu0 %1756
    %v1758 = vsel %vm1745, %v1733, -inf
    %1759 = vmax.xlane.f32.xlu0 %v1758
    %v1760 = vpop.xlane.xlu0 %1759
    %v1761 = vsel %vm1745, %v1734, -inf
    %1762 = vmax.xlane.f32.xlu0 %v1761
    %v1763 = vpop.xlane.xlu0 %1762
    %v1764 = vsel %vm1745, %v1735, -inf
    %1765 = vmax.xlane.f32.xlu0 %v1764
    %v1766 = vpop.xlane.xlu0 %1765
    %v1767 = vsel %vm1745, %v1736, -inf
    %1768 = vmax.xlane.f32.xlu0 %v1767
    %v1769 = vpop.xlane.xlu0 %1768
    %v1770 = vsel %vm1745, %v1737, -inf
    %1771 = vmax.xlane.f32.xlu0 %v1770
    %v1772 = vpop.xlane.xlu0 %1771
    %v1773 = vsel %vm1745, %v1738, -inf
    %1774 = vmax.xlane.f32.xlu0 %v1773
    %v1775 = vpop.xlane.xlu0 %1774
    %v1776 = vsel %vm1745, %v1739, -inf
    %1777 = vmax.xlane.f32.xlu0 %v1776
    %v1778 = vpop.xlane.xlu0 %1777
    %v1779 = vsel %vm1745, %v1740, -inf
    %1780 = vmax.xlane.f32.xlu0 %v1779
    %v1781 = vpop.xlane.xlu0 %1780
    %v1782 = vsel %vm1745, %v1741, -inf
    %1783 = vmax.xlane.f32.xlu0 %v1782
    %v1784 = vpop.xlane.xlu0 %1783
    %v1785 = vsel %vm1745, %v1742, -inf
    %1786 = vmax.xlane.f32.xlu0 %v1785
    %v1787 = vpop.xlane.xlu0 %1786
    %v1788 = vsel %vm1745, %v1743, -inf
    %1789 = vmax.xlane.f32.xlu0 %v1788
    %v1790 = vpop.xlane.xlu0 %1789
    %v1791 = vsel %vm1745, %v1744, -inf
    %1792 = vmax.xlane.f32.xlu0 %v1791
    %v1793 = vpop.xlane.xlu0 %1792
    %v1794 = vsub.f32 %v1729, %v1748
    %v1795 = vsub.f32 %v1730, %v1751
    %v1796 = vsub.f32 %v1731, %v1754
    %v1797 = vsub.f32 %v1732, %v1757
    %v1798 = vsub.f32 %v1733, %v1760
    %v1799 = vsub.f32 %v1734, %v1763
    %v1800 = vsub.f32 %v1735, %v1766
    %v1801 = vsub.f32 %v1736, %v1769
    %v1802 = vsub.f32 %v1737, %v1772
    %v1803 = vsub.f32 %v1738, %v1775
    %v1804 = vsub.f32 %v1739, %v1778
    %v1805 = vsub.f32 %v1740, %v1781
    %v1806 = vsub.f32 %v1741, %v1784
    %v1807 = vsub.f32 %v1742, %v1787
    %v1808 = vsub.f32 %v1743, %v1790
    %v1809 = vsub.f32 %v1744, %v1793
    %v1810 = vmul.f32 %v1794, 1.442695
    %v1811 = vpow.pop %v1810
    %v1812 = vmul.f32 %v1795, 1.442695
    %v1813 = vpow.pop %v1812
    %v1814 = vmul.f32 %v1796, 1.442695
    %v1815 = vpow.pop %v1814
    %v1816 = vmul.f32 %v1797, 1.442695
    %v1817 = vpow.pop %v1816
    %v1818 = vmul.f32 %v1798, 1.442695
    %v1819 = vpow.pop %v1818
    %v1820 = vmul.f32 %v1799, 1.442695
    %v1821 = vpow.pop %v1820
    %v1822 = vmul.f32 %v1800, 1.442695
    %v1823 = vpow.pop %v1822
    %v1824 = vmul.f32 %v1801, 1.442695
    %v1825 = vpow.pop %v1824
    %v1826 = vmul.f32 %v1802, 1.442695
    %v1827 = vpow.pop %v1826
    %v1828 = vmul.f32 %v1803, 1.442695
    %v1829 = vpow.pop %v1828
    %v1830 = vmul.f32 %v1804, 1.442695
    %v1831 = vpow.pop %v1830
    %v1832 = vmul.f32 %v1805, 1.442695
    %v1833 = vpow.pop %v1832
    %v1834 = vmul.f32 %v1806, 1.442695
    %v1835 = vpow.pop %v1834
    %v1836 = vmul.f32 %v1807, 1.442695
    %v1837 = vpow.pop %v1836
    %v1838 = vmul.f32 %v1808, 1.442695
    %v1839 = vpow.pop %v1838
    %v1840 = vmul.f32 %v1809, 1.442695
    %v1841 = vpow.pop %v1840
    %v1842 = vsel %vm1745, %v1811, 0.0
    %1843 = vadd.xlane.f32.xlu0 %v1842
    %v1844 = vpop.xlane.xlu0 %1843
    %v1845 = vsel %vm1745, %v1813, 0.0
    %1846 = vadd.xlane.f32.xlu0 %v1845
    %v1847 = vpop.xlane.xlu0 %1846
    %v1848 = vsel %vm1745, %v1815, 0.0
    %1849 = vadd.xlane.f32.xlu0 %v1848
    %v1850 = vpop.xlane.xlu0 %1849
    %v1851 = vsel %vm1745, %v1817, 0.0
    %1852 = vadd.xlane.f32.xlu0 %v1851
    %v1853 = vpop.xlane.xlu0 %1852
    %v1854 = vsel %vm1745, %v1819, 0.0
    %1855 = vadd.xlane.f32.xlu0 %v1854
    %v1856 = vpop.xlane.xlu0 %1855
    %v1857 = vsel %vm1745, %v1821, 0.0
    %1858 = vadd.xlane.f32.xlu0 %v1857
    %v1859 = vpop.xlane.xlu0 %1858
    %v1860 = vsel %vm1745, %v1823, 0.0
    %1861 = vadd.xlane.f32.xlu0 %v1860
    %v1862 = vpop.xlane.xlu0 %1861
    %v1863 = vsel %vm1745, %v1825, 0.0
    %1864 = vadd.xlane.f32.xlu0 %v1863
    %v1865 = vpop.xlane.xlu0 %1864
    %v1866 = vsel %vm1745, %v1827, 0.0
    %1867 = vadd.xlane.f32.xlu0 %v1866
    %v1868 = vpop.xlane.xlu0 %1867
    %v1869 = vsel %vm1745, %v1829, 0.0
    %1870 = vadd.xlane.f32.xlu0 %v1869
    %v1871 = vpop.xlane.xlu0 %1870
    %v1872 = vsel %vm1745, %v1831, 0.0
    %1873 = vadd.xlane.f32.xlu0 %v1872
    %v1874 = vpop.xlane.xlu0 %1873
    %v1875 = vsel %vm1745, %v1833, 0.0
    %1876 = vadd.xlane.f32.xlu0 %v1875
    %v1877 = vpop.xlane.xlu0 %1876
    %v1878 = vsel %vm1745, %v1835, 0.0
    %1879 = vadd.xlane.f32.xlu0 %v1878
    %v1880 = vpop.xlane.xlu0 %1879
    %v1881 = vsel %vm1745, %v1837, 0.0
    %1882 = vadd.xlane.f32.xlu0 %v1881
    %v1883 = vpop.xlane.xlu0 %1882
    %v1884 = vsel %vm1745, %v1839, 0.0
    %1885 = vadd.xlane.f32.xlu0 %v1884
    %v1886 = vpop.xlane.xlu0 %1885
    %v1887 = vsel %vm1745, %v1841, 0.0
    %1888 = vadd.xlane.f32.xlu0 %v1887
    %v1889 = vpop.xlane.xlu0 %1888
    %v1890 = vrcp.pop %v1844
    %v1891 = vrcp.pop %v1847
    %v1892 = vrcp.pop %v1850
    %v1893 = vrcp.pop %v1853
    %v1894 = vrcp.pop %v1856
    %v1895 = vrcp.pop %v1859
    %v1896 = vrcp.pop %v1862
    %v1897 = vrcp.pop %v1865
    %v1898 = vrcp.pop %v1868
    %v1899 = vrcp.pop %v1871
    %v1900 = vrcp.pop %v1874
    %v1901 = vrcp.pop %v1877
    %v1902 = vrcp.pop %v1880
    %v1903 = vrcp.pop %v1883
    %v1904 = vrcp.pop %v1886
    %v1905 = vrcp.pop %v1889
    %v1906 = vmul.f32 %v1811, %v1890
    %v1907 = vmul.f32 %v1813, %v1891
    %v1908 = vmul.f32 %v1815, %v1892
    %v1909 = vmul.f32 %v1817, %v1893
    %v1910 = vmul.f32 %v1819, %v1894
    %v1911 = vmul.f32 %v1821, %v1895
    %v1912 = vmul.f32 %v1823, %v1896
    %v1913 = vmul.f32 %v1825, %v1897
    %v1914 = vmul.f32 %v1827, %v1898
    %v1915 = vmul.f32 %v1829, %v1899
    %v1916 = vmul.f32 %v1831, %v1900
    %v1917 = vmul.f32 %v1833, %v1901
    %v1918 = vmul.f32 %v1835, %v1902
    %v1919 = vmul.f32 %v1837, %v1903
    %v1920 = vmul.f32 %v1839, %v1904
    %v1921 = vmul.f32 %v1841, %v1905
    %v1923 = vsel %vm1745, %v1906, 0
    %v1926 = vsel %vm1745, %v1907, 0
    %v1929 = vsel %vm1745, %v1908, 0
    %v1932 = vsel %vm1745, %v1909, 0
    %v1935 = vsel %vm1745, %v1910, 0
    %v1938 = vsel %vm1745, %v1911, 0
    %v1941 = vsel %vm1745, %v1912, 0
    %v1944 = vsel %vm1745, %v1913, 0
    %1946 = vmatpush.msra.mxu0 0.0
    %1947 = vmatpush.msra.mxu0 0.0
    %1948 = vmatpush.msra.mxu0 0.0
    %1949 = vmatpush.msra.mxu0 0.0
    %1950 = vmatpush.msra.mxu0 0.0
    %1951 = vmatpush.msra.mxu0 0.0
    %1952 = vmatpush.msra.mxu0 0.0
    %1953 = vmatpush.msra.mxu0 0.0
    %1954 = vmatpush.msra.mxu0 0.0
    %1955 = vmatpush.msra.mxu0 0.0
    %1956 = vmatpush.msra.mxu0 0.0
    %1957 = vmatpush.msra.mxu0 0.0
    %1958 = vmatpush.msra.mxu0 0.0
    %1959 = vmatpush.msra.mxu0 0.0
    %1960 = vmatpush.msra.mxu0 0.0
    %1961 = vmatpush.msra.mxu0 %v1588
    %1962 = vmatmul.f32.gmra.mxu0 %v1923
    %v1963 = vpop.f32.mrf.mxu0
    %v1964 = vadd.f32 0.0, %v1963
    %1965 = vmatmul.f32.gmra.mxu0 %v1926
    %v1966 = vpop.f32.mrf.mxu0
    %v1967 = vadd.f32 0.0, %v1966
    %1968 = vmatmul.f32.gmra.mxu0 %v1929
    %v1969 = vpop.f32.mrf.mxu0
    %v1970 = vadd.f32 0.0, %v1969
    %1971 = vmatmul.f32.gmra.mxu0 %v1932
    %v1972 = vpop.f32.mrf.mxu0
    %v1973 = vadd.f32 0.0, %v1972
    %1974 = vmatmul.f32.gmra.mxu0 %v1935
    %v1975 = vpop.f32.mrf.mxu0
    %v1976 = vadd.f32 0.0, %v1975
    %1977 = vmatmul.f32.gmra.mxu0 %v1938
    %v1978 = vpop.f32.mrf.mxu0
    %v1979 = vadd.f32 0.0, %v1978
    %1980 = vmatmul.f32.gmra.mxu0 %v1941
    %v1981 = vpop.f32.mrf.mxu0
    %v1982 = vadd.f32 0.0, %v1981
    %1983 = vmatmul.f32.gmra.mxu0 %v1944
    %v1984 = vpop.f32.mrf.mxu0
    %v1985 = vadd.f32 0.0, %v1984
    %1986 = vdwg.mxu0
    %v1988 = vsel %vm1745, %v1914, 0
    %v1991 = vsel %vm1745, %v1915, 0
    %v1994 = vsel %vm1745, %v1916, 0
    %v1997 = vsel %vm1745, %v1917, 0
    %v2000 = vsel %vm1745, %v1918, 0
    %v2003 = vsel %vm1745, %v1919, 0
    %v2006 = vsel %vm1745, %v1920, 0
    %v2009 = vsel %vm1745, %v1921, 0
    %2011 = vmatpush.msra.mxu0 0.0
    %2012 = vmatpush.msra.mxu0 0.0
    %2013 = vmatpush.msra.mxu0 0.0
    %2014 = vmatpush.msra.mxu0 0.0
    %2015 = vmatpush.msra.mxu0 0.0
    %2016 = vmatpush.msra.mxu0 0.0
    %2017 = vmatpush.msra.mxu0 0.0
    %2018 = vmatpush.msra.mxu0 0.0
    %2019 = vmatpush.msra.mxu0 0.0
    %2020 = vmatpush.msra.mxu0 0.0
    %2021 = vmatpush.msra.mxu0 0.0
    %2022 = vmatpush.msra.mxu0 0.0
    %2023 = vmatpush.msra.mxu0 0.0
    %2024 = vmatpush.msra.mxu0 0.0
    %2025 = vmatpush.msra.mxu0 0.0
    %2026 = vmatpush.msra.mxu0 %v1591
    %2027 = vmatmul.f32.gmra.mxu0 %v1988
    %v2028 = vpop.f32.mrf.mxu0
    %v2029 = vadd.f32 0.0, %v2028
    %2030 = vmatmul.f32.gmra.mxu0 %v1991
    %v2031 = vpop.f32.mrf.mxu0
    %v2032 = vadd.f32 0.0, %v2031
    %2033 = vmatmul.f32.gmra.mxu0 %v1994
    %v2034 = vpop.f32.mrf.mxu0
    %v2035 = vadd.f32 0.0, %v2034
    %2036 = vmatmul.f32.gmra.mxu0 %v1997
    %v2037 = vpop.f32.mrf.mxu0
    %v2038 = vadd.f32 0.0, %v2037
    %2039 = vmatmul.f32.gmra.mxu0 %v2000
    %v2040 = vpop.f32.mrf.mxu0
    %v2041 = vadd.f32 0.0, %v2040
    %2042 = vmatmul.f32.gmra.mxu0 %v2003
    %v2043 = vpop.f32.mrf.mxu0
    %v2044 = vadd.f32 0.0, %v2043
    %2045 = vmatmul.f32.gmra.mxu0 %v2006
    %v2046 = vpop.f32.mrf.mxu0
    %v2047 = vadd.f32 0.0, %v2046
    %2048 = vmatmul.f32.gmra.mxu0 %v2009
    %v2049 = vpop.f32.mrf.mxu0
    %v2050 = vadd.f32 0.0, %v2049
    %2051 = vdwg.mxu0
    %2056 = vrot.lane.b32.xlu0 %v47, 96
    %v2057 = vpop.permute.xlu0 %2056
    %2058 = vrot.lane.b32.xlu0 %v49, 96
    %v2059 = vpop.permute.xlu0 %2058
    %2060 = vrot.lane.b32.xlu0 %v51, 96
    %v2061 = vpop.permute.xlu0 %2060
    %2062 = vrot.lane.b32.xlu0 %v53, 96
    %v2063 = vpop.permute.xlu0 %2062
    %v2069 = vsel %vm62, %v1964, 0
    %v2072 = vsel %vm62, %v1967, 0
    %v2075 = vsel %vm62, %v1970, 0
    %v2078 = vsel %vm62, %v1973, 0
    %v2081 = vsel %vm62, %v1976, 0
    %v2084 = vsel %vm62, %v1979, 0
    %v2087 = vsel %vm62, %v1982, 0
    %v2090 = vsel %vm62, %v1985, 0
    %v2093 = vsel %vm62, %v2029, 0
    %v2096 = vsel %vm62, %v2032, 0
    %v2099 = vsel %vm62, %v2035, 0
    %v2102 = vsel %vm62, %v2038, 0
    %v2105 = vsel %vm62, %v2041, 0
    %v2108 = vsel %vm62, %v2044, 0
    %v2111 = vsel %vm62, %v2047, 0
    %v2114 = vsel %vm62, %v2050, 0
    %2116 = vmatpush.msra.mxu0 0.0
    %2117 = vmatpush.msra.mxu0 0.0
    %2118 = vmatpush.msra.mxu0 0.0
    %2119 = vmatpush.msra.mxu0 0.0
    %2120 = vmatpush.msra.mxu0 0.0
    %2121 = vmatpush.msra.mxu0 0.0
    %2122 = vmatpush.msra.mxu0 0.0
    %2123 = vmatpush.msra.mxu0 0.0
    %2124 = vmatpush.msra.mxu0 0.0
    %2125 = vmatpush.msra.mxu0 0.0
    %2126 = vmatpush.msra.mxu0 0.0
    %2127 = vmatpush.msra.mxu0 0.0
    %2128 = vmatpush.msra.mxu0 %v2063
    %2129 = vmatpush.msra.mxu0 %v2061
    %2130 = vmatpush.msra.mxu0 %v2059
    %2131 = vmatpush.msra.mxu0 %v2057
    %2132 = vmatmul.f32.gmra.mxu0 %v2069
    %v2133 = vpop.f32.mrf.mxu0
    %v2134 = vadd.f32 0.0, %v2133
    %2135 = vmatmul.f32.gmra.mxu0 %v2072
    %v2136 = vpop.f32.mrf.mxu0
    %v2137 = vadd.f32 0.0, %v2136
    %2138 = vmatmul.f32.gmra.mxu0 %v2075
    %v2139 = vpop.f32.mrf.mxu0
    %v2140 = vadd.f32 0.0, %v2139
    %2141 = vmatmul.f32.gmra.mxu0 %v2078
    %v2142 = vpop.f32.mrf.mxu0
    %v2143 = vadd.f32 0.0, %v2142
    %2144 = vmatmul.f32.gmra.mxu0 %v2081
    %v2145 = vpop.f32.mrf.mxu0
    %v2146 = vadd.f32 0.0, %v2145
    %2147 = vmatmul.f32.gmra.mxu0 %v2084
    %v2148 = vpop.f32.mrf.mxu0
    %v2149 = vadd.f32 0.0, %v2148
    %2150 = vmatmul.f32.gmra.mxu0 %v2087
    %v2151 = vpop.f32.mrf.mxu0
    %v2152 = vadd.f32 0.0, %v2151
    %2153 = vmatmul.f32.gmra.mxu0 %v2090
    %v2154 = vpop.f32.mrf.mxu0
    %v2155 = vadd.f32 0.0, %v2154
    %2156 = vmatmul.f32.gmra.mxu0 %v2093
    %v2157 = vpop.f32.mrf.mxu0
    %v2158 = vadd.f32 0.0, %v2157
    %2159 = vmatmul.f32.gmra.mxu0 %v2096
    %v2160 = vpop.f32.mrf.mxu0
    %v2161 = vadd.f32 0.0, %v2160
    %2162 = vmatmul.f32.gmra.mxu0 %v2099
    %v2163 = vpop.f32.mrf.mxu0
    %v2164 = vadd.f32 0.0, %v2163
    %2165 = vmatmul.f32.gmra.mxu0 %v2102
    %v2166 = vpop.f32.mrf.mxu0
    %v2167 = vadd.f32 0.0, %v2166
    %2168 = vmatmul.f32.gmra.mxu0 %v2105
    %v2169 = vpop.f32.mrf.mxu0
    %v2170 = vadd.f32 0.0, %v2169
    %2171 = vmatmul.f32.gmra.mxu0 %v2108
    %v2172 = vpop.f32.mrf.mxu0
    %v2173 = vadd.f32 0.0, %v2172
    %2174 = vmatmul.f32.gmra.mxu0 %v2111
    %v2175 = vpop.f32.mrf.mxu0
    %v2176 = vadd.f32 0.0, %v2175
    %2177 = vmatmul.f32.gmra.mxu0 %v2114
    %v2178 = vpop.f32.mrf.mxu0
    %v2179 = vadd.f32 0.0, %v2178
    %2180 = vdwg.mxu0
    %v2181 = vadd.f32 %v1388, %v2134
    %v2182 = vadd.f32 %v1389, %v2137
    %v2183 = vadd.f32 %v1390, %v2140
    %v2184 = vadd.f32 %v1391, %v2143
    %v2185 = vadd.f32 %v1392, %v2146
    %v2186 = vadd.f32 %v1393, %v2149
    %v2187 = vadd.f32 %v1394, %v2152
    %v2188 = vadd.f32 %v1395, %v2155
    %v2189 = vadd.f32 %v1396, %v2158
    %v2190 = vadd.f32 %v1397, %v2161
    %v2191 = vadd.f32 %v1398, %v2164
    %v2192 = vadd.f32 %v1399, %v2167
    %v2193 = vadd.f32 %v1400, %v2170
    %v2194 = vadd.f32 %v1401, %v2173
    %v2195 = vadd.f32 %v1402, %v2176
    %v2196 = vadd.f32 %v1403, %v2179
    %2197 = vrot.lane.b32.xlu0 %v47, 64
    %v2198 = vpop.permute.xlu0 %2197
    %2199 = vrot.lane.b32.xlu0 %v49, 64
    %v2200 = vpop.permute.xlu0 %2199
    %2201 = vrot.lane.b32.xlu0 %v51, 64
    %v2202 = vpop.permute.xlu0 %2201
    %2203 = vrot.lane.b32.xlu0 %v53, 64
    %v2204 = vpop.permute.xlu0 %2203
    %2209 = vrot.lane.b32.xlu0 %v60, 32
    %v2210 = vpop.permute.xlu0 %2209
    %v2213 = vsel %vm62, %v2181, 0
    %v2216 = vsel %vm62, %v2182, 0
    %v2219 = vsel %vm62, %v2183, 0
    %v2222 = vsel %vm62, %v2184, 0
    %v2225 = vsel %vm62, %v2185, 0
    %v2228 = vsel %vm62, %v2186, 0
    %v2231 = vsel %vm62, %v2187, 0
    %v2234 = vsel %vm62, %v2188, 0
    %v2237 = vsel %vm62, %v2189, 0
    %v2240 = vsel %vm62, %v2190, 0
    %v2243 = vsel %vm62, %v2191, 0
    %v2246 = vsel %vm62, %v2192, 0
    %v2249 = vsel %vm62, %v2193, 0
    %v2252 = vsel %vm62, %v2194, 0
    %v2255 = vsel %vm62, %v2195, 0
    %v2258 = vsel %vm62, %v2196, 0
    %2260 = vmatpush.msra.mxu0 0.0
    %2261 = vmatpush.msra.mxu0 0.0
    %2262 = vmatpush.msra.mxu0 0.0
    %2263 = vmatpush.msra.mxu0 0.0
    %2264 = vmatpush.msra.mxu0 0.0
    %2265 = vmatpush.msra.mxu0 0.0
    %2266 = vmatpush.msra.mxu0 0.0
    %2267 = vmatpush.msra.mxu0 0.0
    %2268 = vmatpush.msra.mxu0 0.0
    %2269 = vmatpush.msra.mxu0 0.0
    %2270 = vmatpush.msra.mxu0 0.0
    %2271 = vmatpush.msra.mxu0 0.0
    %2272 = vmatpush.msra.mxu0 %v2204
    %2273 = vmatpush.msra.mxu0 %v2202
    %2274 = vmatpush.msra.mxu0 %v2200
    %2275 = vmatpush.msra.mxu0 %v2198
    %2276 = vmatmul.f32.gmra.mxu0 %v2213
    %v2277 = vpop.f32.mrf.mxu0
    %v2278 = vadd.f32 %v2210, %v2277
    %2279 = vmatmul.f32.gmra.mxu0 %v2216
    %v2280 = vpop.f32.mrf.mxu0
    %v2281 = vadd.f32 %v2210, %v2280
    %2282 = vmatmul.f32.gmra.mxu0 %v2219
    %v2283 = vpop.f32.mrf.mxu0
    %v2284 = vadd.f32 %v2210, %v2283
    %2285 = vmatmul.f32.gmra.mxu0 %v2222
    %v2286 = vpop.f32.mrf.mxu0
    %v2287 = vadd.f32 %v2210, %v2286
    %2288 = vmatmul.f32.gmra.mxu0 %v2225
    %v2289 = vpop.f32.mrf.mxu0
    %v2290 = vadd.f32 %v2210, %v2289
    %2291 = vmatmul.f32.gmra.mxu0 %v2228
    %v2292 = vpop.f32.mrf.mxu0
    %v2293 = vadd.f32 %v2210, %v2292
    %2294 = vmatmul.f32.gmra.mxu0 %v2231
    %v2295 = vpop.f32.mrf.mxu0
    %v2296 = vadd.f32 %v2210, %v2295
    %2297 = vmatmul.f32.gmra.mxu0 %v2234
    %v2298 = vpop.f32.mrf.mxu0
    %v2299 = vadd.f32 %v2210, %v2298
    %2300 = vmatmul.f32.gmra.mxu0 %v2237
    %v2301 = vpop.f32.mrf.mxu0
    %v2302 = vadd.f32 %v2210, %v2301
    %2303 = vmatmul.f32.gmra.mxu0 %v2240
    %v2304 = vpop.f32.mrf.mxu0
    %v2305 = vadd.f32 %v2210, %v2304
    %2306 = vmatmul.f32.gmra.mxu0 %v2243
    %v2307 = vpop.f32.mrf.mxu0
    %v2308 = vadd.f32 %v2210, %v2307
    %2309 = vmatmul.f32.gmra.mxu0 %v2246
    %v2310 = vpop.f32.mrf.mxu0
    %v2311 = vadd.f32 %v2210, %v2310
    %2312 = vmatmul.f32.gmra.mxu0 %v2249
    %v2313 = vpop.f32.mrf.mxu0
    %v2314 = vadd.f32 %v2210, %v2313
    %2315 = vmatmul.f32.gmra.mxu0 %v2252
    %v2316 = vpop.f32.mrf.mxu0
    %v2317 = vadd.f32 %v2210, %v2316
    %2318 = vmatmul.f32.gmra.mxu0 %v2255
    %v2319 = vpop.f32.mrf.mxu0
    %v2320 = vadd.f32 %v2210, %v2319
    %2321 = vmatmul.f32.gmra.mxu0 %v2258
    %v2322 = vpop.f32.mrf.mxu0
    %v2323 = vadd.f32 %v2210, %v2322
    %2324 = vdwg.mxu0
    %v2325 = vsub.f32 %v2278, %v682
    %v2326 = vsub.f32 %v2281, %v683
    %v2327 = vsub.f32 %v2284, %v684
    %v2328 = vsub.f32 %v2287, %v685
    %v2329 = vsub.f32 %v2290, %v686
    %v2330 = vsub.f32 %v2293, %v687
    %v2331 = vsub.f32 %v2296, %v688
    %v2332 = vsub.f32 %v2299, %v689
    %v2333 = vsub.f32 %v2302, %v690
    %v2334 = vsub.f32 %v2305, %v691
    %v2335 = vsub.f32 %v2308, %v692
    %v2336 = vsub.f32 %v2311, %v693
    %v2337 = vsub.f32 %v2314, %v694
    %v2338 = vsub.f32 %v2317, %v695
    %v2339 = vsub.f32 %v2320, %v696
    %v2340 = vsub.f32 %v2323, %v697
    %v2341 = vmul.f32 %v2325, %v2325
    %v2342 = vmul.f32 %v2326, %v2326
    %v2343 = vmul.f32 %v2327, %v2327
    %v2344 = vmul.f32 %v2328, %v2328
    %v2345 = vmul.f32 %v2329, %v2329
    %v2346 = vmul.f32 %v2330, %v2330
    %v2347 = vmul.f32 %v2331, %v2331
    %v2348 = vmul.f32 %v2332, %v2332
    %v2349 = vmul.f32 %v2333, %v2333
    %v2350 = vmul.f32 %v2334, %v2334
    %v2351 = vmul.f32 %v2335, %v2335
    %v2352 = vmul.f32 %v2336, %v2336
    %v2353 = vmul.f32 %v2337, %v2337
    %v2354 = vmul.f32 %v2338, %v2338
    %v2355 = vmul.f32 %v2339, %v2339
    %v2356 = vmul.f32 %v2340, %v2340
    %v2357 = vsel %vm973, %v2341, 0.0
    %v2358 = vsel %vm973, %v2342, 0.0
    %v2359 = vadd.f32 %v2357, %v2358
    %v2360 = vsel %vm973, %v2343, 0.0
    %v2361 = vadd.f32 %v2359, %v2360
    %v2362 = vsel %vm973, %v2344, 0.0
    %v2363 = vadd.f32 %v2361, %v2362
    %v2364 = vsel %vm973, %v2345, 0.0
    %v2365 = vadd.f32 %v2363, %v2364
    %v2366 = vsel %vm973, %v2346, 0.0
    %v2367 = vadd.f32 %v2365, %v2366
    %v2368 = vsel %vm973, %v2347, 0.0
    %v2369 = vadd.f32 %v2367, %v2368
    %v2370 = vsel %vm973, %v2348, 0.0
    %v2371 = vadd.f32 %v2369, %v2370
    %v2372 = vsel %vm973, %v2349, 0.0
    %v2373 = vadd.f32 %v2371, %v2372
    %v2374 = vsel %vm973, %v2350, 0.0
    %v2375 = vadd.f32 %v2373, %v2374
    %v2376 = vsel %vm973, %v2351, 0.0
    %v2377 = vadd.f32 %v2375, %v2376
    %v2378 = vsel %vm973, %v2352, 0.0
    %v2379 = vadd.f32 %v2377, %v2378
    %v2380 = vsel %vm973, %v2353, 0.0
    %v2381 = vadd.f32 %v2379, %v2380
    %v2382 = vsel %vm973, %v2354, 0.0
    %v2383 = vadd.f32 %v2381, %v2382
    %v2384 = vsel %vm973, %v2355, 0.0
    %v2385 = vadd.f32 %v2383, %v2384
    %v2386 = vsel %vm973, %v2356, 0.0
    %v2387 = vadd.f32 %v2385, %v2386
    %2388 = vadd.xlane.f32.xlu0 %v2387
    %v2389 = vpop.xlane.xlu0 %2388
    %v2390 = vrot.slane %v2389, 4
    %v2391 = vadd.f32 %v2389, %v2390
    %v2392 = vrot.slane %v2391, 2
    %v2393 = vadd.f32 %v2391, %v2392
    %v2394 = vrot.slane %v2393, 1
    %v2395 = vadd.f32 %v2393, %v2394
    %s2396 = vtos %v2395
    %v2397 = vrcp.pop 512.0
    %v2398 = vmul.f32 512.0, %v2397
    %v2399 = vsub.f32 1.0, %v2398
    %v2400 = vmul.f32 %v2397, %v2399
    %v2401 = vadd.f32 %v2397, %v2400
    %vm2402 = vweird.f32 %v2397
    %v2403 = vsel %vm2402, %v2397, %v2401
    %s2404 = vtos %v2403
    %s2405 = smul.f32 %s2396, %s2404
    %s2406 = scalar_lea.smem [#allocation2], 0
    %2407 = sst [smem:[%s2406]] %s2405
    // Predicated region
    $region54: #{_forward_impl.3} parent=1 // pred_check
      _
    $region55: #{_forward_impl.3} parent=1 // pred_check_branch
      %2409 = sbr.rel (0) target = $region57
    $region56: #{_forward_impl.3} parent=1 // pred_region
      %2411 = vsyncadd [#allocation3], 0
      %s2413 = sshll.u32 %s13, 4
      %s2414 = int_to_ptr.hbm [resolvable:$true] %s2413
      %2416 = dma.smem_to_hbm [#allocation2], 16, %s2414, [#allocation3]
    $region57: #{_forward_impl.3} parent=1 // pred_fallthru
      _
    // Predicated region
    $region58: #{_forward_impl.3} parent=1 // pred_check
      _
    $region59: #{_forward_impl.3} parent=1 // pred_check_branch
      %2418 = sbr.rel (0) target = $region61
    $region60: #{_forward_impl.3} parent=1 // pred_region
      %2420 = dma.done [#allocation3], 16
    $region61: #{_forward_impl.3} parent=1 // pred_fallthru
      _
    %2421 = sfence
    %2422 = vsyncpa [#allocation3], 1

</llo_original>
